<compile_context>
chip_gen: v5e
topology: v5e:2x2
jax: 0.10.0
libtpu: 0.0.40
codegen_flags: <defaults>
</compile_context>

<pallas_src>
import jax
import jax.numpy as jnp
from jax.experimental import pallas as pl


# ----------------------------------------------------------------------------
# Fused kernel: both LSTM layers (interleaved) + FC head, single invocation.
#   x_ref:     (T*B, Dp)   time-major flattened input, lane-padded to Dp (mult. of 8)
#   slab0_ref: (Dp+H+1, 4H)  [ W_ih0T (padded to Dp rows) ; W_hh0T ; b0_row ]
#   slab1_ref: (2H+3,  4H)   [ W_ih1T ; W_hh1T ; b1_row ; wfc_row(pad) ; bfc_row(pad) ]
#   out_ref:   (B, 1)        prediction (only HBM output)
# ----------------------------------------------------------------------------
def tec_fused_kernel(x_ref, slab0_ref, slab1_ref, out_ref):
    TB, Dp = x_ref.shape
    B = out_ref.shape[0]
    T = TB // B
    H = slab0_ref.shape[1] // 4

    # Sublane-aligned static slices of the packed weight slabs (one-time loads,
    # held in vregs across the unrolled recurrence; ~15 vregs total at H=32).
    wih0T = slab0_ref[0:Dp, :]                  # (Dp, 4H)  zero-padded rows are inert
    whh0T = slab0_ref[Dp:Dp + H, :]             # (H, 4H)
    b0 = slab0_ref[Dp + H:Dp + H + 1, :]        # (1, 4H)
    w1cat = slab1_ref[0:2 * H, :]               # (2H, 4H) = [W_ih1T ; W_hh1T]
    tail = slab1_ref[2 * H:2 * H + 3, :]        # (3, 4H): [b1 ; wfc(pad) ; bfc(pad)]
    b1 = tail[0:1, :]                           # (1, 4H)

    def cell(gates, c_prev):
        # One sigmoid + one tanh pass over the whole (B,4H) gate vreg, then slice
        # the already-activated chunks (identical math to per-gate activation).
        sg = jax.nn.sigmoid(gates)
        th = jnp.tanh(gates)
        i_g = sg[:, 0 * H:1 * H]
        f_g = sg[:, 1 * H:2 * H]
        g_g = th[:, 2 * H:3 * H]
        o_g = sg[:, 3 * H:4 * H]
        c_new = f_g * c_prev + i_g * g_g
        h_new = o_g * jnp.tanh(c_new)
        return h_new, c_new

    # Layer-1 input projection for ALL timesteps: one MXU op, off the serial chain.
    gx1 = jnp.dot(x_ref[...], wih0T, preferred_element_type=jnp.float32) + b0  # (T*B,4H)

    h1 = jnp.zeros((B, H), jnp.float32)
    c1 = jnp.zeros((B, H), jnp.float32)
    h2 = jnp.zeros((B, H), jnp.float32)
    c2 = jnp.zeros((B, H), jnp.float32)

    # Static unroll; layers interleaved so the critical path is ~T+1 stages and the
    # scheduler can overlap layer-1 step t+1 MXU work with layer-2 step t EUP work.
    for t in range(T):
        g1 = gx1[t * B:(t + 1) * B, :] + jnp.dot(
            h1, whh0T, preferred_element_type=jnp.float32)
        h1, c1 = cell(g1, c1)

        cat = jnp.concatenate([h1, h2], axis=-1)                 # (B, 2H)
        g2 = jnp.dot(cat, w1cat, preferred_element_type=jnp.float32) + b1
        h2, c2 = cell(g2, c2)

    # FC head on VPU + lane reduction (no MXU push in the epilogue).
    wfc_row = tail[1:2, 0:H]                                     # (1, H)
    bfc = tail[2:3, 0:1]                                         # (1, 1)
    out_ref[...] = jnp.sum(h2 * wfc_row, axis=-1, keepdims=True) + bfc


# ----------------------------------------------------------------------------
# Wrapper: layout plumbing + single pallas_call (no grid; whole working set <100 KiB
# lives in VMEM as default whole-array blocks).
# ----------------------------------------------------------------------------
@jax.jit
def tec_predictor_forward(x, params):
    # x: (B, T, input_size), batch_first like nn.LSTM(batch_first=True)
    B, T, D = x.shape
    slab0, slab1 = params["slab0"], params["slab1"]
    H = slab0.shape[1] // 4
    Dp = slab0.shape[0] - H - 1
    # Time-major, flattened to (T*B, D), lane-padded to Dp so every in-kernel slice of
    # slab0 lands on a sublane boundary (wrapper-side layout plumbing, not compute).
    x_tm = jnp.transpose(x, (1, 0, 2)).reshape(T * B, D)
    x_pad = jnp.pad(x_tm.astype(jnp.float32), ((0, 0), (0, Dp - D)))
    return pl.pallas_call(
        tec_fused_kernel,
        out_shape=jax.ShapeDtypeStruct((B, 1), jnp.float32),
    )(x_pad, slab0, slab1)


# ----------------------------------------------------------------------------
# Deterministic parameter init (PyTorch-style uniform(-1/sqrt(H), 1/sqrt(H)))
# + packing into the two dense kernel slabs.
# ----------------------------------------------------------------------------
def init_params(key, input_size, hidden_size):
    H = hidden_size
    k = 1.0 / jnp.sqrt(H)
    keys = jax.random.split(key, 10)

    def u(k_, shape):
        return jax.random.uniform(k_, shape, jnp.float32, -k, k)

    w_ih0 = u(keys[0], (4 * H, input_size))
    w_hh0 = u(keys[1], (4 * H, H))
    b_ih0 = u(keys[2], (4 * H,))
    b_hh0 = u(keys[3], (4 * H,))
    w_ih1 = u(keys[4], (4 * H, H))
    w_hh1 = u(keys[5], (4 * H, H))
    b_ih1 = u(keys[6], (4 * H,))
    b_hh1 = u(keys[7], (4 * H,))
    w_fc = u(keys[8], (1, H))
    b_fc = u(keys[9], (1,))

    # ---- pack layer-1 slab: [W_ih0T (row-padded to mult. of 8) ; W_hh0T ; b0] ----
    Dp = ((input_size + 7) // 8) * 8
    wih0T_pad = jnp.zeros((Dp, 4 * H), jnp.float32).at[:input_size, :].set(w_ih0.T)
    slab0 = jnp.concatenate(
        [wih0T_pad, w_hh0.T, (b_ih0 + b_hh0).reshape(1, 4 * H)], axis=0)

    # ---- pack layer-2 slab: [W_ih1T ; W_hh1T ; b1 ; wfc(padded) ; bfc(padded)] ----
    wfc_row = jnp.zeros((1, 4 * H), jnp.float32).at[:, :H].set(w_fc)
    bfc_row = jnp.zeros((1, 4 * H), jnp.float32).at[:, :1].set(b_fc.reshape(1, 1))
    slab1 = jnp.concatenate(
        [w_ih1.T, w_hh1.T, (b_ih1 + b_hh1).reshape(1, 4 * H), wfc_row, bfc_row], axis=0)

    params = {"slab0": slab0, "slab1": slab1}
    raw = dict(w_ih0=w_ih0, w_hh0=w_hh0, b_ih0=b_ih0, b_hh0=b_hh0,
               w_ih1=w_ih1, w_hh1=w_hh1, b_ih1=b_ih1, b_hh1=b_hh1,
               w_fc=w_fc, b_fc=b_fc)
    return params, raw


# ----------------------------------------------------------------------------
# Pure-JAX reference (lax.scan) to validate the kernel semantics.
# ----------------------------------------------------------------------------
def lstm_ref(x, w_ih, w_hh, b_ih, b_hh):
    B = x.shape[0]
    H = w_hh.shape[1]

    def cell(carry, x_t):
        h, c = carry
        gates = x_t @ w_ih.T + h @ w_hh.T + b_ih + b_hh
        i, f, g, o = jnp.split(gates, 4, axis=-1)
        c = jax.nn.sigmoid(f) * c + jax.nn.sigmoid(i) * jnp.tanh(g)
        h = jax.nn.sigmoid(o) * jnp.tanh(c)
        return (h, c), h

    init = (jnp.zeros((B, H), jnp.float32), jnp.zeros((B, H), jnp.float32))
    _, hs = jax.lax.scan(cell, init, jnp.transpose(x, (1, 0, 2)))
    return jnp.transpose(hs, (1, 0, 2))


def forward_ref(x, raw):
    h1 = lstm_ref(x, raw["w_ih0"], raw["w_hh0"], raw["b_ih0"], raw["b_hh0"])
    h2 = lstm_ref(h1, raw["w_ih1"], raw["w_hh1"], raw["b_ih1"], raw["b_hh1"])
    return h2[:, -1, :] @ raw["w_fc"].T + raw["b_fc"]


if __name__ == "__main__":
    B, T, INPUT_SIZE, HIDDEN = 2, 8, 4, 32

    key = jax.random.PRNGKey(0)
    k_params, k_x = jax.random.split(key)
    params, raw = init_params(k_params, INPUT_SIZE, HIDDEN)
    x = jax.random.normal(k_x, (B, T, INPUT_SIZE), jnp.float32)

    y = tec_predictor_forward(x, params)
    y = jax.block_until_ready(y)

    y_ref = forward_ref(x, raw)
    assert y.shape == (B, 1)
    assert jnp.allclose(y, y_ref, atol=1e-4, rtol=1e-4), (y, y_ref)

    print("KERNEL_OK")
</pallas_src>

<mosaic_0001>
module attributes {stable_mosaic.version = 11 : i64} {
  func.func @tec_fused_kernel(%arg0: memref<16x8xf32, #tpu.memory_space<vmem>>, %arg1: memref<41x128xf32, #tpu.memory_space<vmem>>, %arg2: memref<67x128xf32, #tpu.memory_space<vmem>>, %arg3: memref<2x1xf32, #tpu.memory_space<vmem>>) attributes {dimension_semantics = [], scalar_prefetch = 0 : i64, scratch_operands = 0 : i64, tpu.core_type = #tpu.core_type<tc>} {
    %c0 = arith.constant 0 : index
    %c0_0 = arith.constant 0 : index
    %0 = vector.load %arg1[%c0, %c0_0] : memref<41x128xf32, #tpu.memory_space<vmem>>, vector<8x128xf32>
    %c8 = arith.constant 8 : index
    %c0_1 = arith.constant 0 : index
    %1 = vector.load %arg1[%c8, %c0_1] : memref<41x128xf32, #tpu.memory_space<vmem>>, vector<32x128xf32>
    %c40 = arith.constant 40 : index
    %c0_2 = arith.constant 0 : index
    %2 = vector.load %arg1[%c40, %c0_2] : memref<41x128xf32, #tpu.memory_space<vmem>>, vector<1x128xf32>
    %c0_3 = arith.constant 0 : index
    %c0_4 = arith.constant 0 : index
    %3 = vector.load %arg2[%c0_3, %c0_4] : memref<67x128xf32, #tpu.memory_space<vmem>>, vector<64x128xf32>
    %c64 = arith.constant 64 : index
    %c0_5 = arith.constant 0 : index
    %4 = vector.load %arg2[%c64, %c0_5] : memref<67x128xf32, #tpu.memory_space<vmem>>, vector<3x128xf32>
    %5 = vector.extract_strided_slice %4 {offsets = [0, 0], sizes = [1, 128], strides = [1, 1]} : vector<3x128xf32> to vector<1x128xf32>
    %c0_6 = arith.constant 0 : index
    %c0_7 = arith.constant 0 : index
    %6 = vector.load %arg0[%c0_6, %c0_7] : memref<16x8xf32, #tpu.memory_space<vmem>>, vector<16x8xf32>
    %cst = arith.constant dense<0.000000e+00> : vector<16x128xf32>
    %7 = tpu.matmul %6, %0, %cst {dimension_numbers = #tpu.dot_dimension_numbers<[1], [0], [0], [1], [0, 0, 1, 1], [], []>} : vector<16x8xf32>, vector<8x128xf32>, vector<16x128xf32> -> vector<16x128xf32>
    %8 = vector.broadcast %2 : vector<1x128xf32> to vector<16x128xf32>
    %9 = arith.addf %7, %8 : vector<16x128xf32>
    %cst_8 = arith.constant 0.000000e+00 : f32
    %10 = vector.broadcast %cst_8 : f32 to vector<2x32xf32>
    %cst_9 = arith.constant 0.000000e+00 : f32
    %11 = vector.broadcast %cst_9 : f32 to vector<2x32xf32>
    %cst_10 = arith.constant 0.000000e+00 : f32
    %12 = vector.broadcast %cst_10 : f32 to vector<2x32xf32>
    %cst_11 = arith.constant 0.000000e+00 : f32
    %13 = vector.broadcast %cst_11 : f32 to vector<2x32xf32>
    %14 = vector.extract_strided_slice %9 {offsets = [0, 0], sizes = [2, 128], strides = [1, 1]} : vector<16x128xf32> to vector<2x128xf32>
    %cst_12 = arith.constant dense<0.000000e+00> : vector<2x128xf32>
    %15 = tpu.matmul %10, %1, %cst_12 {dimension_numbers = #tpu.dot_dimension_numbers<[1], [0], [0], [1], [0, 0, 1, 1], [], []>} : vector<2x32xf32>, vector<32x128xf32>, vector<2x128xf32> -> vector<2x128xf32>
    %16 = arith.addf %14, %15 : vector<2x128xf32>
    %17 = arith.negf %16 : vector<2x128xf32>
    %18 = math.exp %17 : vector<2x128xf32>
    %cst_13 = arith.constant 1.000000e+00 : f32
    %19 = vector.broadcast %cst_13 : f32 to vector<2x128xf32>
    %20 = arith.addf %19, %18 : vector<2x128xf32>
    %21 = arith.divf %19, %20 : vector<2x128xf32>
    %22 = math.tanh %16 : vector<2x128xf32>
    %23 = vector.extract_strided_slice %21 {offsets = [0, 0], sizes = [2, 32], strides = [1, 1]} : vector<2x128xf32> to vector<2x32xf32>
    %24 = vector.extract_strided_slice %21 {offsets = [0, 32], sizes = [2, 32], strides = [1, 1]} : vector<2x128xf32> to vector<2x32xf32>
    %25 = vector.extract_strided_slice %22 {offsets = [0, 64], sizes = [2, 32], strides = [1, 1]} : vector<2x128xf32> to vector<2x32xf32>
    %26 = vector.extract_strided_slice %21 {offsets = [0, 96], sizes = [2, 32], strides = [1, 1]} : vector<2x128xf32> to vector<2x32xf32>
    %27 = arith.mulf %24, %11 : vector<2x32xf32>
    %28 = arith.mulf %23, %25 : vector<2x32xf32>
    %29 = arith.addf %27, %28 : vector<2x32xf32>
    %30 = math.tanh %29 : vector<2x32xf32>
    %31 = arith.mulf %26, %30 : vector<2x32xf32>
    %32 = tpu.concatenate %31, %12 in 1 : vector<2x32xf32>, vector<2x32xf32> -> vector<2x64xf32>
    %cst_14 = arith.constant dense<0.000000e+00> : vector<2x128xf32>
    %33 = tpu.matmul %32, %3, %cst_14 {dimension_numbers = #tpu.dot_dimension_numbers<[1], [0], [0], [1], [0, 0, 1, 1], [], []>} : vector<2x64xf32>, vector<64x128xf32>, vector<2x128xf32> -> vector<2x128xf32>
    %34 = vector.broadcast %5 : vector<1x128xf32> to vector<2x128xf32>
    %35 = arith.addf %33, %34 : vector<2x128xf32>
    %36 = arith.negf %35 : vector<2x128xf32>
    %37 = math.exp %36 : vector<2x128xf32>
    %cst_15 = arith.constant 1.000000e+00 : f32
    %38 = vector.broadcast %cst_15 : f32 to vector<2x128xf32>
    %39 = arith.addf %38, %37 : vector<2x128xf32>
    %40 = arith.divf %38, %39 : vector<2x128xf32>
    %41 = math.tanh %35 : vector<2x128xf32>
    %42 = vector.extract_strided_slice %40 {offsets = [0, 0], sizes = [2, 32], strides = [1, 1]} : vector<2x128xf32> to vector<2x32xf32>
    %43 = vector.extract_strided_slice %40 {offsets = [0, 32], sizes = [2, 32], strides = [1, 1]} : vector<2x128xf32> to vector<2x32xf32>
    %44 = vector.extract_strided_slice %41 {offsets = [0, 64], sizes = [2, 32], strides = [1, 1]} : vector<2x128xf32> to vector<2x32xf32>
    %45 = vector.extract_strided_slice %40 {offsets = [0, 96], sizes = [2, 32], strides = [1, 1]} : vector<2x128xf32> to vector<2x32xf32>
    %46 = arith.mulf %43, %13 : vector<2x32xf32>
    %47 = arith.mulf %42, %44 : vector<2x32xf32>
    %48 = arith.addf %46, %47 : vector<2x32xf32>
    %49 = math.tanh %48 : vector<2x32xf32>
    %50 = arith.mulf %45, %49 : vector<2x32xf32>
    %51 = vector.extract_strided_slice %9 {offsets = [2, 0], sizes = [2, 128], strides = [1, 1]} : vector<16x128xf32> to vector<2x128xf32>
    %cst_16 = arith.constant dense<0.000000e+00> : vector<2x128xf32>
    %52 = tpu.matmul %31, %1, %cst_16 {dimension_numbers = #tpu.dot_dimension_numbers<[1], [0], [0], [1], [0, 0, 1, 1], [], []>} : vector<2x32xf32>, vector<32x128xf32>, vector<2x128xf32> -> vector<2x128xf32>
    %53 = arith.addf %51, %52 : vector<2x128xf32>
    %54 = arith.negf %53 : vector<2x128xf32>
    %55 = math.exp %54 : vector<2x128xf32>
    %cst_17 = arith.constant 1.000000e+00 : f32
    %56 = vector.broadcast %cst_17 : f32 to vector<2x128xf32>
    %57 = arith.addf %56, %55 : vector<2x128xf32>
    %58 = arith.divf %56, %57 : vector<2x128xf32>
    %59 = math.tanh %53 : vector<2x128xf32>
    %60 = vector.extract_strided_slice %58 {offsets = [0, 0], sizes = [2, 32], strides = [1, 1]} : vector<2x128xf32> to vector<2x32xf32>
    %61 = vector.extract_strided_slice %58 {offsets = [0, 32], sizes = [2, 32], strides = [1, 1]} : vector<2x128xf32> to vector<2x32xf32>
    %62 = vector.extract_strided_slice %59 {offsets = [0, 64], sizes = [2, 32], strides = [1, 1]} : vector<2x128xf32> to vector<2x32xf32>
    %63 = vector.extract_strided_slice %58 {offsets = [0, 96], sizes = [2, 32], strides = [1, 1]} : vector<2x128xf32> to vector<2x32xf32>
    %64 = arith.mulf %61, %29 : vector<2x32xf32>
    %65 = arith.mulf %60, %62 : vector<2x32xf32>
    %66 = arith.addf %64, %65 : vector<2x32xf32>
    %67 = math.tanh %66 : vector<2x32xf32>
    %68 = arith.mulf %63, %67 : vector<2x32xf32>
    %69 = tpu.concatenate %68, %50 in 1 : vector<2x32xf32>, vector<2x32xf32> -> vector<2x64xf32>
    %cst_18 = arith.constant dense<0.000000e+00> : vector<2x128xf32>
    %70 = tpu.matmul %69, %3, %cst_18 {dimension_numbers = #tpu.dot_dimension_numbers<[1], [0], [0], [1], [0, 0, 1, 1], [], []>} : vector<2x64xf32>, vector<64x128xf32>, vector<2x128xf32> -> vector<2x128xf32>
    %71 = vector.broadcast %5 : vector<1x128xf32> to vector<2x128xf32>
    %72 = arith.addf %70, %71 : vector<2x128xf32>
    %73 = arith.negf %72 : vector<2x128xf32>
    %74 = math.exp %73 : vector<2x128xf32>
    %cst_19 = arith.constant 1.000000e+00 : f32
    %75 = vector.broadcast %cst_19 : f32 to vector<2x128xf32>
    %76 = arith.addf %75, %74 : vector<2x128xf32>
    %77 = arith.divf %75, %76 : vector<2x128xf32>
    %78 = math.tanh %72 : vector<2x128xf32>
    %79 = vector.extract_strided_slice %77 {offsets = [0, 0], sizes = [2, 32], strides = [1, 1]} : vector<2x128xf32> to vector<2x32xf32>
    %80 = vector.extract_strided_slice %77 {offsets = [0, 32], sizes = [2, 32], strides = [1, 1]} : vector<2x128xf32> to vector<2x32xf32>
    %81 = vector.extract_strided_slice %78 {offsets = [0, 64], sizes = [2, 32], strides = [1, 1]} : vector<2x128xf32> to vector<2x32xf32>
    %82 = vector.extract_strided_slice %77 {offsets = [0, 96], sizes = [2, 32], strides = [1, 1]} : vector<2x128xf32> to vector<2x32xf32>
    %83 = arith.mulf %80, %48 : vector<2x32xf32>
    %84 = arith.mulf %79, %81 : vector<2x32xf32>
    %85 = arith.addf %83, %84 : vector<2x32xf32>
    %86 = math.tanh %85 : vector<2x32xf32>
    %87 = arith.mulf %82, %86 : vector<2x32xf32>
    %88 = vector.extract_strided_slice %9 {offsets = [4, 0], sizes = [2, 128], strides = [1, 1]} : vector<16x128xf32> to vector<2x128xf32>
    %cst_20 = arith.constant dense<0.000000e+00> : vector<2x128xf32>
    %89 = tpu.matmul %68, %1, %cst_20 {dimension_numbers = #tpu.dot_dimension_numbers<[1], [0], [0], [1], [0, 0, 1, 1], [], []>} : vector<2x32xf32>, vector<32x128xf32>, vector<2x128xf32> -> vector<2x128xf32>
    %90 = arith.addf %88, %89 : vector<2x128xf32>
    %91 = arith.negf %90 : vector<2x128xf32>
    %92 = math.exp %91 : vector<2x128xf32>
    %cst_21 = arith.constant 1.000000e+00 : f32
    %93 = vector.broadcast %cst_21 : f32 to vector<2x128xf32>
    %94 = arith.addf %93, %92 : vector<2x128xf32>
    %95 = arith.divf %93, %94 : vector<2x128xf32>
    %96 = math.tanh %90 : vector<2x128xf32>
    %97 = vector.extract_strided_slice %95 {offsets = [0, 0], sizes = [2, 32], strides = [1, 1]} : vector<2x128xf32> to vector<2x32xf32>
    %98 = vector.extract_strided_slice %95 {offsets = [0, 32], sizes = [2, 32], strides = [1, 1]} : vector<2x128xf32> to vector<2x32xf32>
    %99 = vector.extract_strided_slice %96 {offsets = [0, 64], sizes = [2, 32], strides = [1, 1]} : vector<2x128xf32> to vector<2x32xf32>
    %100 = vector.extract_strided_slice %95 {offsets = [0, 96], sizes = [2, 32], strides = [1, 1]} : vector<2x128xf32> to vector<2x32xf32>
    %101 = arith.mulf %98, %66 : vector<2x32xf32>
    %102 = arith.mulf %97, %99 : vector<2x32xf32>
    %103 = arith.addf %101, %102 : vector<2x32xf32>
    %104 = math.tanh %103 : vector<2x32xf32>
    %105 = arith.mulf %100, %104 : vector<2x32xf32>
    %106 = tpu.concatenate %105, %87 in 1 : vector<2x32xf32>, vector<2x32xf32> -> vector<2x64xf32>
    %cst_22 = arith.constant dense<0.000000e+00> : vector<2x128xf32>
    %107 = tpu.matmul %106, %3, %cst_22 {dimension_numbers = #tpu.dot_dimension_numbers<[1], [0], [0], [1], [0, 0, 1, 1], [], []>} : vector<2x64xf32>, vector<64x128xf32>, vector<2x128xf32> -> vector<2x128xf32>
    %108 = vector.broadcast %5 : vector<1x128xf32> to vector<2x128xf32>
    %109 = arith.addf %107, %108 : vector<2x128xf32>
    %110 = arith.negf %109 : vector<2x128xf32>
    %111 = math.exp %110 : vector<2x128xf32>
    %cst_23 = arith.constant 1.000000e+00 : f32
    %112 = vector.broadcast %cst_23 : f32 to vector<2x128xf32>
    %113 = arith.addf %112, %111 : vector<2x128xf32>
    %114 = arith.divf %112, %113 : vector<2x128xf32>
    %115 = math.tanh %109 : vector<2x128xf32>
    %116 = vector.extract_strided_slice %114 {offsets = [0, 0], sizes = [2, 32], strides = [1, 1]} : vector<2x128xf32> to vector<2x32xf32>
    %117 = vector.extract_strided_slice %114 {offsets = [0, 32], sizes = [2, 32], strides = [1, 1]} : vector<2x128xf32> to vector<2x32xf32>
    %118 = vector.extract_strided_slice %115 {offsets = [0, 64], sizes = [2, 32], strides = [1, 1]} : vector<2x128xf32> to vector<2x32xf32>
    %119 = vector.extract_strided_slice %114 {offsets = [0, 96], sizes = [2, 32], strides = [1, 1]} : vector<2x128xf32> to vector<2x32xf32>
    %120 = arith.mulf %117, %85 : vector<2x32xf32>
    %121 = arith.mulf %116, %118 : vector<2x32xf32>
    %122 = arith.addf %120, %121 : vector<2x32xf32>
    %123 = math.tanh %122 : vector<2x32xf32>
    %124 = arith.mulf %119, %123 : vector<2x32xf32>
    %125 = vector.extract_strided_slice %9 {offsets = [6, 0], sizes = [2, 128], strides = [1, 1]} : vector<16x128xf32> to vector<2x128xf32>
    %cst_24 = arith.constant dense<0.000000e+00> : vector<2x128xf32>
    %126 = tpu.matmul %105, %1, %cst_24 {dimension_numbers = #tpu.dot_dimension_numbers<[1], [0], [0], [1], [0, 0, 1, 1], [], []>} : vector<2x32xf32>, vector<32x128xf32>, vector<2x128xf32> -> vector<2x128xf32>
    %127 = arith.addf %125, %126 : vector<2x128xf32>
    %128 = arith.negf %127 : vector<2x128xf32>
    %129 = math.exp %128 : vector<2x128xf32>
    %cst_25 = arith.constant 1.000000e+00 : f32
    %130 = vector.broadcast %cst_25 : f32 to vector<2x128xf32>
    %131 = arith.addf %130, %129 : vector<2x128xf32>
    %132 = arith.divf %130, %131 : vector<2x128xf32>
    %133 = math.tanh %127 : vector<2x128xf32>
    %134 = vector.extract_strided_slice %132 {offsets = [0, 0], sizes = [2, 32], strides = [1, 1]} : vector<2x128xf32> to vector<2x32xf32>
    %135 = vector.extract_strided_slice %132 {offsets = [0, 32], sizes = [2, 32], strides = [1, 1]} : vector<2x128xf32> to vector<2x32xf32>
    %136 = vector.extract_strided_slice %133 {offsets = [0, 64], sizes = [2, 32], strides = [1, 1]} : vector<2x128xf32> to vector<2x32xf32>
    %137 = vector.extract_strided_slice %132 {offsets = [0, 96], sizes = [2, 32], strides = [1, 1]} : vector<2x128xf32> to vector<2x32xf32>
    %138 = arith.mulf %135, %103 : vector<2x32xf32>
    %139 = arith.mulf %134, %136 : vector<2x32xf32>
    %140 = arith.addf %138, %139 : vector<2x32xf32>
    %141 = math.tanh %140 : vector<2x32xf32>
    %142 = arith.mulf %137, %141 : vector<2x32xf32>
    %143 = tpu.concatenate %142, %124 in 1 : vector<2x32xf32>, vector<2x32xf32> -> vector<2x64xf32>
    %cst_26 = arith.constant dense<0.000000e+00> : vector<2x128xf32>
    %144 = tpu.matmul %143, %3, %cst_26 {dimension_numbers = #tpu.dot_dimension_numbers<[1], [0], [0], [1], [0, 0, 1, 1], [], []>} : vector<2x64xf32>, vector<64x128xf32>, vector<2x128xf32> -> vector<2x128xf32>
    %145 = vector.broadcast %5 : vector<1x128xf32> to vector<2x128xf32>
    %146 = arith.addf %144, %145 : vector<2x128xf32>
    %147 = arith.negf %146 : vector<2x128xf32>
    %148 = math.exp %147 : vector<2x128xf32>
    %cst_27 = arith.constant 1.000000e+00 : f32
    %149 = vector.broadcast %cst_27 : f32 to vector<2x128xf32>
    %150 = arith.addf %149, %148 : vector<2x128xf32>
    %151 = arith.divf %149, %150 : vector<2x128xf32>
    %152 = math.tanh %146 : vector<2x128xf32>
    %153 = vector.extract_strided_slice %151 {offsets = [0, 0], sizes = [2, 32], strides = [1, 1]} : vector<2x128xf32> to vector<2x32xf32>
    %154 = vector.extract_strided_slice %151 {offsets = [0, 32], sizes = [2, 32], strides = [1, 1]} : vector<2x128xf32> to vector<2x32xf32>
    %155 = vector.extract_strided_slice %152 {offsets = [0, 64], sizes = [2, 32], strides = [1, 1]} : vector<2x128xf32> to vector<2x32xf32>
    %156 = vector.extract_strided_slice %151 {offsets = [0, 96], sizes = [2, 32], strides = [1, 1]} : vector<2x128xf32> to vector<2x32xf32>
    %157 = arith.mulf %154, %122 : vector<2x32xf32>
    %158 = arith.mulf %153, %155 : vector<2x32xf32>
    %159 = arith.addf %157, %158 : vector<2x32xf32>
    %160 = math.tanh %159 : vector<2x32xf32>
    %161 = arith.mulf %156, %160 : vector<2x32xf32>
    %162 = vector.extract_strided_slice %9 {offsets = [8, 0], sizes = [2, 128], strides = [1, 1]} : vector<16x128xf32> to vector<2x128xf32>
    %cst_28 = arith.constant dense<0.000000e+00> : vector<2x128xf32>
    %163 = tpu.matmul %142, %1, %cst_28 {dimension_numbers = #tpu.dot_dimension_numbers<[1], [0], [0], [1], [0, 0, 1, 1], [], []>} : vector<2x32xf32>, vector<32x128xf32>, vector<2x128xf32> -> vector<2x128xf32>
    %164 = arith.addf %162, %163 : vector<2x128xf32>
    %165 = arith.negf %164 : vector<2x128xf32>
    %166 = math.exp %165 : vector<2x128xf32>
    %cst_29 = arith.constant 1.000000e+00 : f32
    %167 = vector.broadcast %cst_29 : f32 to vector<2x128xf32>
    %168 = arith.addf %167, %166 : vector<2x128xf32>
    %169 = arith.divf %167, %168 : vector<2x128xf32>
    %170 = math.tanh %164 : vector<2x128xf32>
    %171 = vector.extract_strided_slice %169 {offsets = [0, 0], sizes = [2, 32], strides = [1, 1]} : vector<2x128xf32> to vector<2x32xf32>
    %172 = vector.extract_strided_slice %169 {offsets = [0, 32], sizes = [2, 32], strides = [1, 1]} : vector<2x128xf32> to vector<2x32xf32>
    %173 = vector.extract_strided_slice %170 {offsets = [0, 64], sizes = [2, 32], strides = [1, 1]} : vector<2x128xf32> to vector<2x32xf32>
    %174 = vector.extract_strided_slice %169 {offsets = [0, 96], sizes = [2, 32], strides = [1, 1]} : vector<2x128xf32> to vector<2x32xf32>
    %175 = arith.mulf %172, %140 : vector<2x32xf32>
    %176 = arith.mulf %171, %173 : vector<2x32xf32>
    %177 = arith.addf %175, %176 : vector<2x32xf32>
    %178 = math.tanh %177 : vector<2x32xf32>
    %179 = arith.mulf %174, %178 : vector<2x32xf32>
    %180 = tpu.concatenate %179, %161 in 1 : vector<2x32xf32>, vector<2x32xf32> -> vector<2x64xf32>
    %cst_30 = arith.constant dense<0.000000e+00> : vector<2x128xf32>
    %181 = tpu.matmul %180, %3, %cst_30 {dimension_numbers = #tpu.dot_dimension_numbers<[1], [0], [0], [1], [0, 0, 1, 1], [], []>} : vector<2x64xf32>, vector<64x128xf32>, vector<2x128xf32> -> vector<2x128xf32>
    %182 = vector.broadcast %5 : vector<1x128xf32> to vector<2x128xf32>
    %183 = arith.addf %181, %182 : vector<2x128xf32>
    %184 = arith.negf %183 : vector<2x128xf32>
    %185 = math.exp %184 : vector<2x128xf32>
    %cst_31 = arith.constant 1.000000e+00 : f32
    %186 = vector.broadcast %cst_31 : f32 to vector<2x128xf32>
    %187 = arith.addf %186, %185 : vector<2x128xf32>
    %188 = arith.divf %186, %187 : vector<2x128xf32>
    %189 = math.tanh %183 : vector<2x128xf32>
    %190 = vector.extract_strided_slice %188 {offsets = [0, 0], sizes = [2, 32], strides = [1, 1]} : vector<2x128xf32> to vector<2x32xf32>
    %191 = vector.extract_strided_slice %188 {offsets = [0, 32], sizes = [2, 32], strides = [1, 1]} : vector<2x128xf32> to vector<2x32xf32>
    %192 = vector.extract_strided_slice %189 {offsets = [0, 64], sizes = [2, 32], strides = [1, 1]} : vector<2x128xf32> to vector<2x32xf32>
    %193 = vector.extract_strided_slice %188 {offsets = [0, 96], sizes = [2, 32], strides = [1, 1]} : vector<2x128xf32> to vector<2x32xf32>
    %194 = arith.mulf %191, %159 : vector<2x32xf32>
    %195 = arith.mulf %190, %192 : vector<2x32xf32>
    %196 = arith.addf %194, %195 : vector<2x32xf32>
    %197 = math.tanh %196 : vector<2x32xf32>
    %198 = arith.mulf %193, %197 : vector<2x32xf32>
    %199 = vector.extract_strided_slice %9 {offsets = [10, 0], sizes = [2, 128], strides = [1, 1]} : vector<16x128xf32> to vector<2x128xf32>
    %cst_32 = arith.constant dense<0.000000e+00> : vector<2x128xf32>
    %200 = tpu.matmul %179, %1, %cst_32 {dimension_numbers = #tpu.dot_dimension_numbers<[1], [0], [0], [1], [0, 0, 1, 1], [], []>} : vector<2x32xf32>, vector<32x128xf32>, vector<2x128xf32> -> vector<2x128xf32>
    %201 = arith.addf %199, %200 : vector<2x128xf32>
    %202 = arith.negf %201 : vector<2x128xf32>
    %203 = math.exp %202 : vector<2x128xf32>
    %cst_33 = arith.constant 1.000000e+00 : f32
    %204 = vector.broadcast %cst_33 : f32 to vector<2x128xf32>
    %205 = arith.addf %204, %203 : vector<2x128xf32>
    %206 = arith.divf %204, %205 : vector<2x128xf32>
    %207 = math.tanh %201 : vector<2x128xf32>
    %208 = vector.extract_strided_slice %206 {offsets = [0, 0], sizes = [2, 32], strides = [1, 1]} : vector<2x128xf32> to vector<2x32xf32>
    %209 = vector.extract_strided_slice %206 {offsets = [0, 32], sizes = [2, 32], strides = [1, 1]} : vector<2x128xf32> to vector<2x32xf32>
    %210 = vector.extract_strided_slice %207 {offsets = [0, 64], sizes = [2, 32], strides = [1, 1]} : vector<2x128xf32> to vector<2x32xf32>
    %211 = vector.extract_strided_slice %206 {offsets = [0, 96], sizes = [2, 32], strides = [1, 1]} : vector<2x128xf32> to vector<2x32xf32>
    %212 = arith.mulf %209, %177 : vector<2x32xf32>
    %213 = arith.mulf %208, %210 : vector<2x32xf32>
    %214 = arith.addf %212, %213 : vector<2x32xf32>
    %215 = math.tanh %214 : vector<2x32xf32>
    %216 = arith.mulf %211, %215 : vector<2x32xf32>
    %217 = tpu.concatenate %216, %198 in 1 : vector<2x32xf32>, vector<2x32xf32> -> vector<2x64xf32>
    %cst_34 = arith.constant dense<0.000000e+00> : vector<2x128xf32>
    %218 = tpu.matmul %217, %3, %cst_34 {dimension_numbers = #tpu.dot_dimension_numbers<[1], [0], [0], [1], [0, 0, 1, 1], [], []>} : vector<2x64xf32>, vector<64x128xf32>, vector<2x128xf32> -> vector<2x128xf32>
    %219 = vector.broadcast %5 : vector<1x128xf32> to vector<2x128xf32>
    %220 = arith.addf %218, %219 : vector<2x128xf32>
    %221 = arith.negf %220 : vector<2x128xf32>
    %222 = math.exp %221 : vector<2x128xf32>
    %cst_35 = arith.constant 1.000000e+00 : f32
    %223 = vector.broadcast %cst_35 : f32 to vector<2x128xf32>
    %224 = arith.addf %223, %222 : vector<2x128xf32>
    %225 = arith.divf %223, %224 : vector<2x128xf32>
    %226 = math.tanh %220 : vector<2x128xf32>
    %227 = vector.extract_strided_slice %225 {offsets = [0, 0], sizes = [2, 32], strides = [1, 1]} : vector<2x128xf32> to vector<2x32xf32>
    %228 = vector.extract_strided_slice %225 {offsets = [0, 32], sizes = [2, 32], strides = [1, 1]} : vector<2x128xf32> to vector<2x32xf32>
    %229 = vector.extract_strided_slice %226 {offsets = [0, 64], sizes = [2, 32], strides = [1, 1]} : vector<2x128xf32> to vector<2x32xf32>
    %230 = vector.extract_strided_slice %225 {offsets = [0, 96], sizes = [2, 32], strides = [1, 1]} : vector<2x128xf32> to vector<2x32xf32>
    %231 = arith.mulf %228, %196 : vector<2x32xf32>
    %232 = arith.mulf %227, %229 : vector<2x32xf32>
    %233 = arith.addf %231, %232 : vector<2x32xf32>
    %234 = math.tanh %233 : vector<2x32xf32>
    %235 = arith.mulf %230, %234 : vector<2x32xf32>
    %236 = vector.extract_strided_slice %9 {offsets = [12, 0], sizes = [2, 128], strides = [1, 1]} : vector<16x128xf32> to vector<2x128xf32>
    %cst_36 = arith.constant dense<0.000000e+00> : vector<2x128xf32>
    %237 = tpu.matmul %216, %1, %cst_36 {dimension_numbers = #tpu.dot_dimension_numbers<[1], [0], [0], [1], [0, 0, 1, 1], [], []>} : vector<2x32xf32>, vector<32x128xf32>, vector<2x128xf32> -> vector<2x128xf32>
    %238 = arith.addf %236, %237 : vector<2x128xf32>
    %239 = arith.negf %238 : vector<2x128xf32>
    %240 = math.exp %239 : vector<2x128xf32>
    %cst_37 = arith.constant 1.000000e+00 : f32
    %241 = vector.broadcast %cst_37 : f32 to vector<2x128xf32>
    %242 = arith.addf %241, %240 : vector<2x128xf32>
    %243 = arith.divf %241, %242 : vector<2x128xf32>
    %244 = math.tanh %238 : vector<2x128xf32>
    %245 = vector.extract_strided_slice %243 {offsets = [0, 0], sizes = [2, 32], strides = [1, 1]} : vector<2x128xf32> to vector<2x32xf32>
    %246 = vector.extract_strided_slice %243 {offsets = [0, 32], sizes = [2, 32], strides = [1, 1]} : vector<2x128xf32> to vector<2x32xf32>
    %247 = vector.extract_strided_slice %244 {offsets = [0, 64], sizes = [2, 32], strides = [1, 1]} : vector<2x128xf32> to vector<2x32xf32>
    %248 = vector.extract_strided_slice %243 {offsets = [0, 96], sizes = [2, 32], strides = [1, 1]} : vector<2x128xf32> to vector<2x32xf32>
    %249 = arith.mulf %246, %214 : vector<2x32xf32>
    %250 = arith.mulf %245, %247 : vector<2x32xf32>
    %251 = arith.addf %249, %250 : vector<2x32xf32>
    %252 = math.tanh %251 : vector<2x32xf32>
    %253 = arith.mulf %248, %252 : vector<2x32xf32>
    %254 = tpu.concatenate %253, %235 in 1 : vector<2x32xf32>, vector<2x32xf32> -> vector<2x64xf32>
    %cst_38 = arith.constant dense<0.000000e+00> : vector<2x128xf32>
    %255 = tpu.matmul %254, %3, %cst_38 {dimension_numbers = #tpu.dot_dimension_numbers<[1], [0], [0], [1], [0, 0, 1, 1], [], []>} : vector<2x64xf32>, vector<64x128xf32>, vector<2x128xf32> -> vector<2x128xf32>
    %256 = vector.broadcast %5 : vector<1x128xf32> to vector<2x128xf32>
    %257 = arith.addf %255, %256 : vector<2x128xf32>
    %258 = arith.negf %257 : vector<2x128xf32>
    %259 = math.exp %258 : vector<2x128xf32>
    %cst_39 = arith.constant 1.000000e+00 : f32
    %260 = vector.broadcast %cst_39 : f32 to vector<2x128xf32>
    %261 = arith.addf %260, %259 : vector<2x128xf32>
    %262 = arith.divf %260, %261 : vector<2x128xf32>
    %263 = math.tanh %257 : vector<2x128xf32>
    %264 = vector.extract_strided_slice %262 {offsets = [0, 0], sizes = [2, 32], strides = [1, 1]} : vector<2x128xf32> to vector<2x32xf32>
    %265 = vector.extract_strided_slice %262 {offsets = [0, 32], sizes = [2, 32], strides = [1, 1]} : vector<2x128xf32> to vector<2x32xf32>
    %266 = vector.extract_strided_slice %263 {offsets = [0, 64], sizes = [2, 32], strides = [1, 1]} : vector<2x128xf32> to vector<2x32xf32>
    %267 = vector.extract_strided_slice %262 {offsets = [0, 96], sizes = [2, 32], strides = [1, 1]} : vector<2x128xf32> to vector<2x32xf32>
    %268 = arith.mulf %265, %233 : vector<2x32xf32>
    %269 = arith.mulf %264, %266 : vector<2x32xf32>
    %270 = arith.addf %268, %269 : vector<2x32xf32>
    %271 = math.tanh %270 : vector<2x32xf32>
    %272 = arith.mulf %267, %271 : vector<2x32xf32>
    %273 = vector.extract_strided_slice %9 {offsets = [14, 0], sizes = [2, 128], strides = [1, 1]} : vector<16x128xf32> to vector<2x128xf32>
    %cst_40 = arith.constant dense<0.000000e+00> : vector<2x128xf32>
    %274 = tpu.matmul %253, %1, %cst_40 {dimension_numbers = #tpu.dot_dimension_numbers<[1], [0], [0], [1], [0, 0, 1, 1], [], []>} : vector<2x32xf32>, vector<32x128xf32>, vector<2x128xf32> -> vector<2x128xf32>
    %275 = arith.addf %273, %274 : vector<2x128xf32>
    %276 = arith.negf %275 : vector<2x128xf32>
    %277 = math.exp %276 : vector<2x128xf32>
    %cst_41 = arith.constant 1.000000e+00 : f32
    %278 = vector.broadcast %cst_41 : f32 to vector<2x128xf32>
    %279 = arith.addf %278, %277 : vector<2x128xf32>
    %280 = arith.divf %278, %279 : vector<2x128xf32>
    %281 = math.tanh %275 : vector<2x128xf32>
    %282 = vector.extract_strided_slice %280 {offsets = [0, 0], sizes = [2, 32], strides = [1, 1]} : vector<2x128xf32> to vector<2x32xf32>
    %283 = vector.extract_strided_slice %280 {offsets = [0, 32], sizes = [2, 32], strides = [1, 1]} : vector<2x128xf32> to vector<2x32xf32>
    %284 = vector.extract_strided_slice %281 {offsets = [0, 64], sizes = [2, 32], strides = [1, 1]} : vector<2x128xf32> to vector<2x32xf32>
    %285 = vector.extract_strided_slice %280 {offsets = [0, 96], sizes = [2, 32], strides = [1, 1]} : vector<2x128xf32> to vector<2x32xf32>
    %286 = arith.mulf %283, %251 : vector<2x32xf32>
    %287 = arith.mulf %282, %284 : vector<2x32xf32>
    %288 = arith.addf %286, %287 : vector<2x32xf32>
    %289 = math.tanh %288 : vector<2x32xf32>
    %290 = arith.mulf %285, %289 : vector<2x32xf32>
    %291 = tpu.concatenate %290, %272 in 1 : vector<2x32xf32>, vector<2x32xf32> -> vector<2x64xf32>
    %cst_42 = arith.constant dense<0.000000e+00> : vector<2x128xf32>
    %292 = tpu.matmul %291, %3, %cst_42 {dimension_numbers = #tpu.dot_dimension_numbers<[1], [0], [0], [1], [0, 0, 1, 1], [], []>} : vector<2x64xf32>, vector<64x128xf32>, vector<2x128xf32> -> vector<2x128xf32>
    %293 = vector.broadcast %5 : vector<1x128xf32> to vector<2x128xf32>
    %294 = arith.addf %292, %293 : vector<2x128xf32>
    %295 = arith.negf %294 : vector<2x128xf32>
    %296 = math.exp %295 : vector<2x128xf32>
    %cst_43 = arith.constant 1.000000e+00 : f32
    %297 = vector.broadcast %cst_43 : f32 to vector<2x128xf32>
    %298 = arith.addf %297, %296 : vector<2x128xf32>
    %299 = arith.divf %297, %298 : vector<2x128xf32>
    %300 = math.tanh %294 : vector<2x128xf32>
    %301 = vector.extract_strided_slice %299 {offsets = [0, 0], sizes = [2, 32], strides = [1, 1]} : vector<2x128xf32> to vector<2x32xf32>
    %302 = vector.extract_strided_slice %299 {offsets = [0, 32], sizes = [2, 32], strides = [1, 1]} : vector<2x128xf32> to vector<2x32xf32>
    %303 = vector.extract_strided_slice %300 {offsets = [0, 64], sizes = [2, 32], strides = [1, 1]} : vector<2x128xf32> to vector<2x32xf32>
    %304 = vector.extract_strided_slice %299 {offsets = [0, 96], sizes = [2, 32], strides = [1, 1]} : vector<2x128xf32> to vector<2x32xf32>
    %305 = arith.mulf %302, %270 : vector<2x32xf32>
    %306 = arith.mulf %301, %303 : vector<2x32xf32>
    %307 = arith.addf %305, %306 : vector<2x32xf32>
    %308 = math.tanh %307 : vector<2x32xf32>
    %309 = arith.mulf %304, %308 : vector<2x32xf32>
    %310 = vector.extract_strided_slice %4 {offsets = [1, 0], sizes = [1, 32], strides = [1, 1]} : vector<3x128xf32> to vector<1x32xf32>
    %311 = vector.extract_strided_slice %4 {offsets = [2, 0], sizes = [1, 1], strides = [1, 1]} : vector<3x128xf32> to vector<1x1xf32>
    %312 = vector.broadcast %310 : vector<1x32xf32> to vector<2x32xf32>
    %313 = arith.mulf %309, %312 : vector<2x32xf32>
    %cst_44 = arith.constant dense<0.000000e+00> : vector<2xf32>
    %314 = vector.multi_reduction <add>, %313, %cst_44 [1] : vector<2x32xf32> to vector<2xf32>
    %315 = vector.shape_cast %314 : vector<2xf32> to vector<2x1xf32>
    %316 = vector.broadcast %311 : vector<1x1xf32> to vector<2x1xf32>
    %317 = arith.addf %315, %316 : vector<2x1xf32>
    %c0_45 = arith.constant 0 : index
    %c0_46 = arith.constant 0 : index
    %318 = vector.load %arg3[%c0_45, %c0_46] : memref<2x1xf32, #tpu.memory_space<vmem>>, vector<2x1xf32>
    tpu.vector_store %arg3[%c0_45, %c0_46], %317 {strides = array<i32>} : memref<2x1xf32, #tpu.memory_space<vmem>>, vector<2x1xf32>,
    return
  }
}

</mosaic_0001>

<llo_original>
// kernel: tec_predictor_forward.1
$region0: #{tec_predictor_forward.1}
  #allocation0 [shape = 'u32[]', space=smem, size = 0x4, offset = 0x4, fixed_abs, tag = 'smem constant byte address 0x4 - core index']
  #allocation1 [shape = 'u32[72,128]{1,0:T(1,128)}', space=vmem, size = 0x9000, scoped, tag = 'internal scratch']
  %s0 = inlined_call_operand.vmem [shape: f32[16,8], index: 0, kind: input, shape index: {}]
  %s1 = inlined_call_operand.vmem [shape: f32[41,128], index: 1, kind: input, shape index: {}]
  %s2 = inlined_call_operand.hbm [shape: f32[67,128], index: 2, kind: input, shape index: {}]
  %s3 = inlined_call_operand.vmem [shape: f32[2,1], index: 3, kind: output, shape index: {}]
  %s4 = sld [smem:[#allocation0]]
  $region26: #{tec_predictor_forward.1} parent=0
    _
  %s6 = ssub.s32 1, %s4
  %s7 = scalar_select 0, %s6, %s4
  $region1: #{tec_predictor_forward.1} parent=0
    #allocation2 [shape = 'u8[36864]{0}', space=vmem, size = 0x9000, scoped, tag = 'input window, operand 2, single buffered']
    #allocation3 [shape = 's32[1]{0}', space=sflag, size = 0x4, scoped, tag = 'scoped memory for tec_predictor_forward.1']
    %8 = vsyncpa [#allocation3], 0
    // Predicated region
    $region2: #{tec_predictor_forward.1} parent=1 // pred_check
      _
    $region3: #{tec_predictor_forward.1} parent=1 // pred_check_branch
      %10 = sbr.rel (0) target = $region5
    $region4: #{tec_predictor_forward.1} parent=1 // pred_region
      _
    $region5: #{tec_predictor_forward.1} parent=1 // pred_fallthru
      _
    // Predicated region
    $region6: #{tec_predictor_forward.1} parent=1 // pred_check
      _
    $region7: #{tec_predictor_forward.1} parent=1 // pred_check_branch
      %12 = sbr.rel (0) target = $region9
    $region8: #{tec_predictor_forward.1} parent=1 // pred_region
      _
    $region9: #{tec_predictor_forward.1} parent=1 // pred_fallthru
      _
    // Predicated region
    $region10: #{tec_predictor_forward.1} parent=1 // pred_check
      _
    $region11: #{tec_predictor_forward.1} parent=1 // pred_check_branch
      %14 = sbr.rel (0) target = $region13
    $region12: #{tec_predictor_forward.1} parent=1 // pred_region
      %16 = vsyncadd [#allocation3], 0
      %s17 = sshll.u32 %s2, 4
      %s18 = int_to_ptr.hbm [resolvable:$true] %s17
      %s19 = sshll.u32 [#allocation2], 4
      %s20 = int_to_ptr.vmem [resolvable:$true] %s19
      %25 = dma.hbm_to_vmem [thread:$0]  %s18, 1152, %s20, [#allocation3], 128, 128, 8
    $region13: #{tec_predictor_forward.1} parent=1 // pred_fallthru
      _
    // Predicated region
    $region14: #{tec_predictor_forward.1} parent=1 // pred_check
      _
    $region15: #{tec_predictor_forward.1} parent=1 // pred_check_branch
      %27 = sbr.rel (0) target = $region17
    $region16: #{tec_predictor_forward.1} parent=1 // pred_region
      %29 = dma.done [#allocation3], 1152
    $region17: #{tec_predictor_forward.1} parent=1 // pred_fallthru
      _
    %v30 = vld [vmem:[%s1] sm:$0xff]
    %v31 = vld [vmem:[%s1 + $0x8] sm:$0xff]
    %v32 = vld [vmem:[%s1 + $0x10] sm:$0xff]
    %v33 = vld [vmem:[%s1 + $0x18] sm:$0xff]
    %v34 = vld [vmem:[%s1 + $0x20] sm:$0xff]
    %v35 = vld [vmem:[%s1 + $0x28] sm:$0x1]
    %v36 = vld [vmem:[#allocation2] sm:$0xff]
    %v37 = vld [vmem:[#allocation2 + $0x8] sm:$0xff]
    %v38 = vld [vmem:[#allocation2 + $0x10] sm:$0xff]
    %v39 = vld [vmem:[#allocation2 + $0x18] sm:$0xff]
    %v40 = vld [vmem:[#allocation2 + $0x20] sm:$0xff]
    %v41 = vld [vmem:[#allocation2 + $0x28] sm:$0xff]
    %v42 = vld [vmem:[#allocation2 + $0x30] sm:$0xff]
    %v43 = vld [vmem:[#allocation2 + $0x38] sm:$0xff]
    %v44 = vld [vmem:[#allocation2 + $0x40] sm:$0x7]
    %v45 = vld [vmem:[%s0] sm:$0xff]
    %v46 = vld [vmem:[%s0 + $0x8] sm:$0xff]
    %v47 = vperm.slane %v35, 0
    %vm48 = vcmask 64512
    %v50 = vsel %vm48, %v45, 0
    %v53 = vsel %vm48, %v46, 0
    %55 = vmatpush.msra.mxu0 0.0
    %56 = vmatpush.msra.mxu0 0.0
    %57 = vmatpush.msra.mxu0 0.0
    %58 = vmatpush.msra.mxu0 0.0
    %59 = vmatpush.msra.mxu0 0.0
    %60 = vmatpush.msra.mxu0 0.0
    %61 = vmatpush.msra.mxu0 0.0
    %62 = vmatpush.msra.mxu0 0.0
    %63 = vmatpush.msra.mxu0 0.0
    %64 = vmatpush.msra.mxu0 0.0
    %65 = vmatpush.msra.mxu0 0.0
    %66 = vmatpush.msra.mxu0 0.0
    %67 = vmatpush.msra.mxu0 0.0
    %68 = vmatpush.msra.mxu0 0.0
    %69 = vmatpush.msra.mxu0 0.0
    %70 = vmatpush.msra.mxu0 %v30
    %71 = vmatmul.f32.gmra.mxu0 %v50
    %v72 = vpop.f32.mrf.mxu0
    %v73 = vadd.f32 %v47, %v72
    %74 = vmatmul.f32.gmra.mxu0 %v53
    %v75 = vpop.f32.mrf.mxu0
    %v76 = vadd.f32 %v47, %v75
    %77 = vdwg.mxu0
    %vm78 = vcmask 261120
    %v80 = vsel %vm78, 0.0, 0
    %82 = vmatpush.msra.mxu0 0.0
    %83 = vmatpush.msra.mxu0 0.0
    %84 = vmatpush.msra.mxu0 0.0
    %85 = vmatpush.msra.mxu0 0.0
    %86 = vmatpush.msra.mxu0 0.0
    %87 = vmatpush.msra.mxu0 0.0
    %88 = vmatpush.msra.mxu0 0.0
    %89 = vmatpush.msra.mxu0 0.0
    %90 = vmatpush.msra.mxu0 0.0
    %91 = vmatpush.msra.mxu0 0.0
    %92 = vmatpush.msra.mxu0 0.0
    %93 = vmatpush.msra.mxu0 0.0
    %94 = vmatpush.msra.mxu0 %v34
    %95 = vmatpush.msra.mxu0 %v33
    %96 = vmatpush.msra.mxu0 %v32
    %97 = vmatpush.msra.mxu0 %v31
    %98 = vmatmul.f32.gmra.mxu0 %v80
    %v99 = vpop.f32.mrf.mxu0
    %v100 = vadd.f32 0.0, %v99
    %101 = vdwg.mxu0
    %v102 = vadd.f32 %v73, %v100
    %v103 = vxor.u32 %v102, 2147483648
    %v104 = vmul.f32 %v103, 1.442695
    %v105 = vpow.pop %v104
    %v106 = vadd.f32 %v105, 1.0
    %v107 = vrcp.pop %v106
    %v108 = vmul.f32 %v106, %v107
    %v109 = vsub.f32 1.0, %v108
    %v110 = vmul.f32 %v107, %v109
    %v111 = vadd.f32 %v107, %v110
    %vm112 = vweird.f32 %v106
    %vm113 = vweird.f32 %v107
    %vm114 = vmor %vm112, %vm113
    %v115 = vsel %vm114, %v107, %v111
    %v116 = vand.u32 2147483647, %v106
    %vm117 = vcmp.eq.f32.partialorder %v116, 8.507059e+37
    %v118 = vand.u32 %v106, 2147483648
    %v119 = vor.u32 1.1754944e-38, %v118
    %v120 = vsel %vm117, %v119, %v115
    %v121 = vmul.f32 1.0, %v120
    %v122 = vtanh.pop %v102
    %v123 = vmul.f32 %v121, 0.0
    %125 = vrot.lane.b32.xlu0 %v122, 64
    %v126 = vpop.permute.xlu0 %125
    %v128 = vmul.f32 %v121, %v126
    %130 = vrot.lane.b32.xlu0 %v128, 32
    %v131 = vpop.permute.xlu0 %130
    %v133 = vadd.f32 %v123, %v131
    %v134 = vtanh.pop %v133
    %136 = vrot.lane.b32.xlu0 %v134, 64
    %v137 = vpop.permute.xlu0 %136
    %v139 = vmul.f32 %v121, %v137
    %141 = vrot.lane.b32.xlu0 %v139, 32
    %v142 = vpop.permute.xlu0 %141
    %v144 = vsel %vm78, %v142, 0.0
    %v145 = vperm.slane %v44, 0
    %vm146 = vcmask 523264
    %v148 = vsel %vm146, %v144, 0
    %150 = vmatpush.msra.mxu0 0.0
    %151 = vmatpush.msra.mxu0 0.0
    %152 = vmatpush.msra.mxu0 0.0
    %153 = vmatpush.msra.mxu0 0.0
    %154 = vmatpush.msra.mxu0 0.0
    %155 = vmatpush.msra.mxu0 0.0
    %156 = vmatpush.msra.mxu0 0.0
    %157 = vmatpush.msra.mxu0 0.0
    %158 = vmatpush.msra.mxu0 %v43
    %159 = vmatpush.msra.mxu0 %v42
    %160 = vmatpush.msra.mxu0 %v41
    %161 = vmatpush.msra.mxu0 %v40
    %162 = vmatpush.msra.mxu0 %v39
    %163 = vmatpush.msra.mxu0 %v38
    %164 = vmatpush.msra.mxu0 %v37
    %165 = vmatpush.msra.mxu0 %v36
    %166 = vmatmul.f32.gmra.mxu0 %v148
    %v167 = vpop.f32.mrf.mxu0
    %v168 = vadd.f32 %v145, %v167
    %169 = vdwg.mxu0
    %v170 = vxor.u32 %v168, 2147483648
    %v171 = vmul.f32 %v170, 1.442695
    %v172 = vpow.pop %v171
    %v173 = vadd.f32 %v172, 1.0
    %v174 = vrcp.pop %v173
    %v175 = vmul.f32 %v173, %v174
    %v176 = vsub.f32 1.0, %v175
    %v177 = vmul.f32 %v174, %v176
    %v178 = vadd.f32 %v174, %v177
    %vm179 = vweird.f32 %v173
    %vm180 = vweird.f32 %v174
    %vm181 = vmor %vm179, %vm180
    %v182 = vsel %vm181, %v174, %v178
    %v183 = vand.u32 2147483647, %v173
    %vm184 = vcmp.eq.f32.partialorder %v183, 8.507059e+37
    %v185 = vand.u32 %v173, 2147483648
    %v186 = vor.u32 1.1754944e-38, %v185
    %v187 = vsel %vm184, %v186, %v182
    %v188 = vmul.f32 1.0, %v187
    %v189 = vtanh.pop %v168
    %v190 = vmul.f32 %v188, 0.0
    %192 = vrot.lane.b32.xlu0 %v189, 64
    %v193 = vpop.permute.xlu0 %192
    %v195 = vmul.f32 %v188, %v193
    %197 = vrot.lane.b32.xlu0 %v195, 32
    %v198 = vpop.permute.xlu0 %197
    %v200 = vadd.f32 %v190, %v198
    %v201 = vtanh.pop %v200
    %203 = vrot.lane.b32.xlu0 %v201, 64
    %v204 = vpop.permute.xlu0 %203
    %v206 = vmul.f32 %v188, %v204
    %v207 = vsel %vm78, %v142, 0
    %209 = vmatpush.msra.mxu0 0.0
    %210 = vmatpush.msra.mxu0 0.0
    %211 = vmatpush.msra.mxu0 0.0
    %212 = vmatpush.msra.mxu0 0.0
    %213 = vmatpush.msra.mxu0 0.0
    %214 = vmatpush.msra.mxu0 0.0
    %215 = vmatpush.msra.mxu0 0.0
    %216 = vmatpush.msra.mxu0 0.0
    %217 = vmatpush.msra.mxu0 0.0
    %218 = vmatpush.msra.mxu0 0.0
    %219 = vmatpush.msra.mxu0 0.0
    %220 = vmatpush.msra.mxu0 0.0
    %221 = vmatpush.msra.mxu0 %v34
    %222 = vmatpush.msra.mxu0 %v33
    %223 = vmatpush.msra.mxu0 %v32
    %224 = vmatpush.msra.mxu0 %v31
    %225 = vmatmul.f32.gmra.mxu0 %v207
    %v226 = vpop.f32.mrf.mxu0
    %v227 = vadd.f32 0.0, %v226
    %228 = vdwg.mxu0
    %v230 = vrot.slane %v227, 6
    %v232 = vadd.f32 %v73, %v230
    %v233 = vxor.u32 %v232, 2147483648
    %v234 = vmul.f32 %v233, 1.442695
    %v235 = vpow.pop %v234
    %v236 = vadd.f32 %v235, 1.0
    %v237 = vrcp.pop %v236
    %v238 = vmul.f32 %v236, %v237
    %v239 = vsub.f32 1.0, %v238
    %v240 = vmul.f32 %v237, %v239
    %v241 = vadd.f32 %v237, %v240
    %vm242 = vweird.f32 %v236
    %vm243 = vweird.f32 %v237
    %vm244 = vmor %vm242, %vm243
    %v245 = vsel %vm244, %v237, %v241
    %v246 = vand.u32 2147483647, %v236
    %vm247 = vcmp.eq.f32.partialorder %v246, 8.507059e+37
    %v248 = vand.u32 %v236, 2147483648
    %v249 = vor.u32 1.1754944e-38, %v248
    %v250 = vsel %vm247, %v249, %v245
    %v251 = vmul.f32 1.0, %v250
    %v252 = vtanh.pop %v232
    %v254 = vrot.slane %v133, 6
    %v256 = vmul.f32 %v251, %v254
    %258 = vrot.lane.b32.xlu0 %v252, 64
    %v259 = vpop.permute.xlu0 %258
    %v261 = vmul.f32 %v251, %v259
    %263 = vrot.lane.b32.xlu0 %v261, 32
    %v264 = vpop.permute.xlu0 %263
    %v266 = vadd.f32 %v256, %v264
    %v267 = vtanh.pop %v266
    %269 = vrot.lane.b32.xlu0 %v267, 64
    %v270 = vpop.permute.xlu0 %269
    %v272 = vmul.f32 %v251, %v270
    %274 = vrot.lane.b32.xlu0 %v272, 32
    %v275 = vpop.permute.xlu0 %274
    %v278 = vrot.slane %v206, 6
    %279 = vrot.lane.b32.xlu0 %v278, 64
    %v280 = vpop.permute.xlu0 %279
    %v282 = vsel %vm78, %v275, %v280
    %v284 = vrot.slane %v282, 2
    %v285 = vsel %vm146, %v284, 0
    %287 = vmatpush.msra.mxu0 0.0
    %288 = vmatpush.msra.mxu0 0.0
    %289 = vmatpush.msra.mxu0 0.0
    %290 = vmatpush.msra.mxu0 0.0
    %291 = vmatpush.msra.mxu0 0.0
    %292 = vmatpush.msra.mxu0 0.0
    %293 = vmatpush.msra.mxu0 0.0
    %294 = vmatpush.msra.mxu0 0.0
    %295 = vmatpush.msra.mxu0 %v43
    %296 = vmatpush.msra.mxu0 %v42
    %297 = vmatpush.msra.mxu0 %v41
    %298 = vmatpush.msra.mxu0 %v40
    %299 = vmatpush.msra.mxu0 %v39
    %300 = vmatpush.msra.mxu0 %v38
    %301 = vmatpush.msra.mxu0 %v37
    %302 = vmatpush.msra.mxu0 %v36
    %303 = vmatmul.f32.gmra.mxu0 %v285
    %v304 = vpop.f32.mrf.mxu0
    %v305 = vadd.f32 %v145, %v304
    %306 = vdwg.mxu0
    %v307 = vxor.u32 %v305, 2147483648
    %v308 = vmul.f32 %v307, 1.442695
    %v309 = vpow.pop %v308
    %v310 = vadd.f32 %v309, 1.0
    %v311 = vrcp.pop %v310
    %v312 = vmul.f32 %v310, %v311
    %v313 = vsub.f32 1.0, %v312
    %v314 = vmul.f32 %v311, %v313
    %v315 = vadd.f32 %v311, %v314
    %vm316 = vweird.f32 %v310
    %vm317 = vweird.f32 %v311
    %vm318 = vmor %vm316, %vm317
    %v319 = vsel %vm318, %v311, %v315
    %v320 = vand.u32 2147483647, %v310
    %vm321 = vcmp.eq.f32.partialorder %v320, 8.507059e+37
    %v322 = vand.u32 %v310, 2147483648
    %v323 = vor.u32 1.1754944e-38, %v322
    %v324 = vsel %vm321, %v323, %v319
    %v325 = vmul.f32 1.0, %v324
    %v326 = vtanh.pop %v305
    %v327 = vmul.f32 %v325, %v200
    %329 = vrot.lane.b32.xlu0 %v326, 64
    %v330 = vpop.permute.xlu0 %329
    %v332 = vmul.f32 %v325, %v330
    %334 = vrot.lane.b32.xlu0 %v332, 32
    %v335 = vpop.permute.xlu0 %334
    %v337 = vadd.f32 %v327, %v335
    %v338 = vtanh.pop %v337
    %340 = vrot.lane.b32.xlu0 %v338, 64
    %v341 = vpop.permute.xlu0 %340
    %v343 = vmul.f32 %v325, %v341
    %v344 = vrot.slane %v272, 2
    %345 = vrot.lane.b32.xlu0 %v344, 32
    %v346 = vpop.permute.xlu0 %345
    %v347 = vsel %vm78, %v346, 0
    %349 = vmatpush.msra.mxu0 0.0
    %350 = vmatpush.msra.mxu0 0.0
    %351 = vmatpush.msra.mxu0 0.0
    %352 = vmatpush.msra.mxu0 0.0
    %353 = vmatpush.msra.mxu0 0.0
    %354 = vmatpush.msra.mxu0 0.0
    %355 = vmatpush.msra.mxu0 0.0
    %356 = vmatpush.msra.mxu0 0.0
    %357 = vmatpush.msra.mxu0 0.0
    %358 = vmatpush.msra.mxu0 0.0
    %359 = vmatpush.msra.mxu0 0.0
    %360 = vmatpush.msra.mxu0 0.0
    %361 = vmatpush.msra.mxu0 %v34
    %362 = vmatpush.msra.mxu0 %v33
    %363 = vmatpush.msra.mxu0 %v32
    %364 = vmatpush.msra.mxu0 %v31
    %365 = vmatmul.f32.gmra.mxu0 %v347
    %v366 = vpop.f32.mrf.mxu0
    %v367 = vadd.f32 0.0, %v366
    %368 = vdwg.mxu0
    %v370 = vrot.slane %v367, 4
    %v372 = vadd.f32 %v73, %v370
    %v373 = vxor.u32 %v372, 2147483648
    %v374 = vmul.f32 %v373, 1.442695
    %v375 = vpow.pop %v374
    %v376 = vadd.f32 %v375, 1.0
    %v377 = vrcp.pop %v376
    %v378 = vmul.f32 %v376, %v377
    %v379 = vsub.f32 1.0, %v378
    %v380 = vmul.f32 %v377, %v379
    %v381 = vadd.f32 %v377, %v380
    %vm382 = vweird.f32 %v376
    %vm383 = vweird.f32 %v377
    %vm384 = vmor %vm382, %vm383
    %v385 = vsel %vm384, %v377, %v381
    %v386 = vand.u32 2147483647, %v376
    %vm387 = vcmp.eq.f32.partialorder %v386, 8.507059e+37
    %v388 = vand.u32 %v376, 2147483648
    %v389 = vor.u32 1.1754944e-38, %v388
    %v390 = vsel %vm387, %v389, %v385
    %v391 = vmul.f32 1.0, %v390
    %v392 = vtanh.pop %v372
    %v394 = vrot.slane %v266, 6
    %v396 = vmul.f32 %v391, %v394
    %398 = vrot.lane.b32.xlu0 %v392, 64
    %v399 = vpop.permute.xlu0 %398
    %v401 = vmul.f32 %v391, %v399
    %403 = vrot.lane.b32.xlu0 %v401, 32
    %v404 = vpop.permute.xlu0 %403
    %v406 = vadd.f32 %v396, %v404
    %v407 = vtanh.pop %v406
    %409 = vrot.lane.b32.xlu0 %v407, 64
    %v410 = vpop.permute.xlu0 %409
    %v412 = vmul.f32 %v391, %v410
    %414 = vrot.lane.b32.xlu0 %v412, 32
    %v415 = vpop.permute.xlu0 %414
    %v418 = vrot.slane %v343, 4
    %419 = vrot.lane.b32.xlu0 %v418, 64
    %v420 = vpop.permute.xlu0 %419
    %v422 = vsel %vm78, %v415, %v420
    %v424 = vrot.slane %v422, 4
    %v425 = vsel %vm146, %v424, 0
    %427 = vmatpush.msra.mxu0 0.0
    %428 = vmatpush.msra.mxu0 0.0
    %429 = vmatpush.msra.mxu0 0.0
    %430 = vmatpush.msra.mxu0 0.0
    %431 = vmatpush.msra.mxu0 0.0
    %432 = vmatpush.msra.mxu0 0.0
    %433 = vmatpush.msra.mxu0 0.0
    %434 = vmatpush.msra.mxu0 0.0
    %435 = vmatpush.msra.mxu0 %v43
    %436 = vmatpush.msra.mxu0 %v42
    %437 = vmatpush.msra.mxu0 %v41
    %438 = vmatpush.msra.mxu0 %v40
    %439 = vmatpush.msra.mxu0 %v39
    %440 = vmatpush.msra.mxu0 %v38
    %441 = vmatpush.msra.mxu0 %v37
    %442 = vmatpush.msra.mxu0 %v36
    %443 = vmatmul.f32.gmra.mxu0 %v425
    %v444 = vpop.f32.mrf.mxu0
    %v445 = vadd.f32 %v145, %v444
    %446 = vdwg.mxu0
    %v447 = vxor.u32 %v445, 2147483648
    %v448 = vmul.f32 %v447, 1.442695
    %v449 = vpow.pop %v448
    %v450 = vadd.f32 %v449, 1.0
    %v451 = vrcp.pop %v450
    %v452 = vmul.f32 %v450, %v451
    %v453 = vsub.f32 1.0, %v452
    %v454 = vmul.f32 %v451, %v453
    %v455 = vadd.f32 %v451, %v454
    %vm456 = vweird.f32 %v450
    %vm457 = vweird.f32 %v451
    %vm458 = vmor %vm456, %vm457
    %v459 = vsel %vm458, %v451, %v455
    %v460 = vand.u32 2147483647, %v450
    %vm461 = vcmp.eq.f32.partialorder %v460, 8.507059e+37
    %v462 = vand.u32 %v450, 2147483648
    %v463 = vor.u32 1.1754944e-38, %v462
    %v464 = vsel %vm461, %v463, %v459
    %v465 = vmul.f32 1.0, %v464
    %v466 = vtanh.pop %v445
    %v467 = vmul.f32 %v465, %v337
    %469 = vrot.lane.b32.xlu0 %v466, 64
    %v470 = vpop.permute.xlu0 %469
    %v472 = vmul.f32 %v465, %v470
    %474 = vrot.lane.b32.xlu0 %v472, 32
    %v475 = vpop.permute.xlu0 %474
    %v477 = vadd.f32 %v467, %v475
    %v478 = vtanh.pop %v477
    %480 = vrot.lane.b32.xlu0 %v478, 64
    %v481 = vpop.permute.xlu0 %480
    %v483 = vmul.f32 %v465, %v481
    %v484 = vrot.slane %v412, 4
    %485 = vrot.lane.b32.xlu0 %v484, 32
    %v486 = vpop.permute.xlu0 %485
    %v487 = vsel %vm78, %v486, 0
    %489 = vmatpush.msra.mxu0 0.0
    %490 = vmatpush.msra.mxu0 0.0
    %491 = vmatpush.msra.mxu0 0.0
    %492 = vmatpush.msra.mxu0 0.0
    %493 = vmatpush.msra.mxu0 0.0
    %494 = vmatpush.msra.mxu0 0.0
    %495 = vmatpush.msra.mxu0 0.0
    %496 = vmatpush.msra.mxu0 0.0
    %497 = vmatpush.msra.mxu0 0.0
    %498 = vmatpush.msra.mxu0 0.0
    %499 = vmatpush.msra.mxu0 0.0
    %500 = vmatpush.msra.mxu0 0.0
    %501 = vmatpush.msra.mxu0 %v34
    %502 = vmatpush.msra.mxu0 %v33
    %503 = vmatpush.msra.mxu0 %v32
    %504 = vmatpush.msra.mxu0 %v31
    %505 = vmatmul.f32.gmra.mxu0 %v487
    %v506 = vpop.f32.mrf.mxu0
    %v507 = vadd.f32 0.0, %v506
    %508 = vdwg.mxu0
    %v510 = vrot.slane %v507, 2
    %v512 = vadd.f32 %v73, %v510
    %v513 = vxor.u32 %v512, 2147483648
    %v514 = vmul.f32 %v513, 1.442695
    %v515 = vpow.pop %v514
    %v516 = vadd.f32 %v515, 1.0
    %v517 = vrcp.pop %v516
    %v518 = vmul.f32 %v516, %v517
    %v519 = vsub.f32 1.0, %v518
    %v520 = vmul.f32 %v517, %v519
    %v521 = vadd.f32 %v517, %v520
    %vm522 = vweird.f32 %v516
    %vm523 = vweird.f32 %v517
    %vm524 = vmor %vm522, %vm523
    %v525 = vsel %vm524, %v517, %v521
    %v526 = vand.u32 2147483647, %v516
    %vm527 = vcmp.eq.f32.partialorder %v526, 8.507059e+37
    %v528 = vand.u32 %v516, 2147483648
    %v529 = vor.u32 1.1754944e-38, %v528
    %v530 = vsel %vm527, %v529, %v525
    %v531 = vmul.f32 1.0, %v530
    %v532 = vtanh.pop %v512
    %v534 = vrot.slane %v406, 6
    %v536 = vmul.f32 %v531, %v534
    %538 = vrot.lane.b32.xlu0 %v532, 64
    %v539 = vpop.permute.xlu0 %538
    %v541 = vmul.f32 %v531, %v539
    %543 = vrot.lane.b32.xlu0 %v541, 32
    %v544 = vpop.permute.xlu0 %543
    %v546 = vadd.f32 %v536, %v544
    %v547 = vtanh.pop %v546
    %549 = vrot.lane.b32.xlu0 %v547, 64
    %v550 = vpop.permute.xlu0 %549
    %v552 = vmul.f32 %v531, %v550
    %554 = vrot.lane.b32.xlu0 %v552, 32
    %v555 = vpop.permute.xlu0 %554
    %v558 = vrot.slane %v483, 2
    %559 = vrot.lane.b32.xlu0 %v558, 64
    %v560 = vpop.permute.xlu0 %559
    %v562 = vsel %vm78, %v555, %v560
    %v564 = vrot.slane %v562, 6
    %v565 = vsel %vm146, %v564, 0
    %567 = vmatpush.msra.mxu0 0.0
    %568 = vmatpush.msra.mxu0 0.0
    %569 = vmatpush.msra.mxu0 0.0
    %570 = vmatpush.msra.mxu0 0.0
    %571 = vmatpush.msra.mxu0 0.0
    %572 = vmatpush.msra.mxu0 0.0
    %573 = vmatpush.msra.mxu0 0.0
    %574 = vmatpush.msra.mxu0 0.0
    %575 = vmatpush.msra.mxu0 %v43
    %576 = vmatpush.msra.mxu0 %v42
    %577 = vmatpush.msra.mxu0 %v41
    %578 = vmatpush.msra.mxu0 %v40
    %579 = vmatpush.msra.mxu0 %v39
    %580 = vmatpush.msra.mxu0 %v38
    %581 = vmatpush.msra.mxu0 %v37
    %582 = vmatpush.msra.mxu0 %v36
    %583 = vmatmul.f32.gmra.mxu0 %v565
    %v584 = vpop.f32.mrf.mxu0
    %v585 = vadd.f32 %v145, %v584
    %586 = vdwg.mxu0
    %v587 = vxor.u32 %v585, 2147483648
    %v588 = vmul.f32 %v587, 1.442695
    %v589 = vpow.pop %v588
    %v590 = vadd.f32 %v589, 1.0
    %v591 = vrcp.pop %v590
    %v592 = vmul.f32 %v590, %v591
    %v593 = vsub.f32 1.0, %v592
    %v594 = vmul.f32 %v591, %v593
    %v595 = vadd.f32 %v591, %v594
    %vm596 = vweird.f32 %v590
    %vm597 = vweird.f32 %v591
    %vm598 = vmor %vm596, %vm597
    %v599 = vsel %vm598, %v591, %v595
    %v600 = vand.u32 2147483647, %v590
    %vm601 = vcmp.eq.f32.partialorder %v600, 8.507059e+37
    %v602 = vand.u32 %v590, 2147483648
    %v603 = vor.u32 1.1754944e-38, %v602
    %v604 = vsel %vm601, %v603, %v599
    %v605 = vmul.f32 1.0, %v604
    %v606 = vtanh.pop %v585
    %v607 = vmul.f32 %v605, %v477
    %609 = vrot.lane.b32.xlu0 %v606, 64
    %v610 = vpop.permute.xlu0 %609
    %v612 = vmul.f32 %v605, %v610
    %614 = vrot.lane.b32.xlu0 %v612, 32
    %v615 = vpop.permute.xlu0 %614
    %v617 = vadd.f32 %v607, %v615
    %v618 = vtanh.pop %v617
    %620 = vrot.lane.b32.xlu0 %v618, 64
    %v621 = vpop.permute.xlu0 %620
    %v623 = vmul.f32 %v605, %v621
    %v624 = vrot.slane %v552, 6
    %625 = vrot.lane.b32.xlu0 %v624, 32
    %v626 = vpop.permute.xlu0 %625
    %v627 = vsel %vm78, %v626, 0
    %629 = vmatpush.msra.mxu0 0.0
    %630 = vmatpush.msra.mxu0 0.0
    %631 = vmatpush.msra.mxu0 0.0
    %632 = vmatpush.msra.mxu0 0.0
    %633 = vmatpush.msra.mxu0 0.0
    %634 = vmatpush.msra.mxu0 0.0
    %635 = vmatpush.msra.mxu0 0.0
    %636 = vmatpush.msra.mxu0 0.0
    %637 = vmatpush.msra.mxu0 0.0
    %638 = vmatpush.msra.mxu0 0.0
    %639 = vmatpush.msra.mxu0 0.0
    %640 = vmatpush.msra.mxu0 0.0
    %641 = vmatpush.msra.mxu0 %v34
    %642 = vmatpush.msra.mxu0 %v33
    %643 = vmatpush.msra.mxu0 %v32
    %644 = vmatpush.msra.mxu0 %v31
    %645 = vmatmul.f32.gmra.mxu0 %v627
    %v646 = vpop.f32.mrf.mxu0
    %v647 = vadd.f32 0.0, %v646
    %648 = vdwg.mxu0
    %v649 = vadd.f32 %v76, %v647
    %v650 = vxor.u32 %v649, 2147483648
    %v651 = vmul.f32 %v650, 1.442695
    %v652 = vpow.pop %v651
    %v653 = vadd.f32 %v652, 1.0
    %v654 = vrcp.pop %v653
    %v655 = vmul.f32 %v653, %v654
    %v656 = vsub.f32 1.0, %v655
    %v657 = vmul.f32 %v654, %v656
    %v658 = vadd.f32 %v654, %v657
    %vm659 = vweird.f32 %v653
    %vm660 = vweird.f32 %v654
    %vm661 = vmor %vm659, %vm660
    %v662 = vsel %vm661, %v654, %v658
    %v663 = vand.u32 2147483647, %v653
    %vm664 = vcmp.eq.f32.partialorder %v663, 8.507059e+37
    %v665 = vand.u32 %v653, 2147483648
    %v666 = vor.u32 1.1754944e-38, %v665
    %v667 = vsel %vm664, %v666, %v662
    %v668 = vmul.f32 1.0, %v667
    %v669 = vtanh.pop %v649
    %v671 = vrot.slane %v546, 6
    %v673 = vmul.f32 %v668, %v671
    %675 = vrot.lane.b32.xlu0 %v669, 64
    %v676 = vpop.permute.xlu0 %675
    %v678 = vmul.f32 %v668, %v676
    %680 = vrot.lane.b32.xlu0 %v678, 32
    %v681 = vpop.permute.xlu0 %680
    %v683 = vadd.f32 %v673, %v681
    %v684 = vtanh.pop %v683
    %686 = vrot.lane.b32.xlu0 %v684, 64
    %v687 = vpop.permute.xlu0 %686
    %v689 = vmul.f32 %v668, %v687
    %691 = vrot.lane.b32.xlu0 %v689, 32
    %v692 = vpop.permute.xlu0 %691
    %695 = vrot.lane.b32.xlu0 %v623, 64
    %v696 = vpop.permute.xlu0 %695
    %v698 = vsel %vm78, %v692, %v696
    %v700 = vsel %vm146, %v698, 0
    %702 = vmatpush.msra.mxu0 0.0
    %703 = vmatpush.msra.mxu0 0.0
    %704 = vmatpush.msra.mxu0 0.0
    %705 = vmatpush.msra.mxu0 0.0
    %706 = vmatpush.msra.mxu0 0.0
    %707 = vmatpush.msra.mxu0 0.0
    %708 = vmatpush.msra.mxu0 0.0
    %709 = vmatpush.msra.mxu0 0.0
    %710 = vmatpush.msra.mxu0 %v43
    %711 = vmatpush.msra.mxu0 %v42
    %712 = vmatpush.msra.mxu0 %v41
    %713 = vmatpush.msra.mxu0 %v40
    %714 = vmatpush.msra.mxu0 %v39
    %715 = vmatpush.msra.mxu0 %v38
    %716 = vmatpush.msra.mxu0 %v37
    %717 = vmatpush.msra.mxu0 %v36
    %718 = vmatmul.f32.gmra.mxu0 %v700
    %v719 = vpop.f32.mrf.mxu0
    %v720 = vadd.f32 %v145, %v719
    %721 = vdwg.mxu0
    %v722 = vxor.u32 %v720, 2147483648
    %v723 = vmul.f32 %v722, 1.442695
    %v724 = vpow.pop %v723
    %v725 = vadd.f32 %v724, 1.0
    %v726 = vrcp.pop %v725
    %v727 = vmul.f32 %v725, %v726
    %v728 = vsub.f32 1.0, %v727
    %v729 = vmul.f32 %v726, %v728
    %v730 = vadd.f32 %v726, %v729
    %vm731 = vweird.f32 %v725
    %vm732 = vweird.f32 %v726
    %vm733 = vmor %vm731, %vm732
    %v734 = vsel %vm733, %v726, %v730
    %v735 = vand.u32 2147483647, %v725
    %vm736 = vcmp.eq.f32.partialorder %v735, 8.507059e+37
    %v737 = vand.u32 %v725, 2147483648
    %v738 = vor.u32 1.1754944e-38, %v737
    %v739 = vsel %vm736, %v738, %v734
    %v740 = vmul.f32 1.0, %v739
    %v741 = vtanh.pop %v720
    %v742 = vmul.f32 %v740, %v617
    %744 = vrot.lane.b32.xlu0 %v741, 64
    %v745 = vpop.permute.xlu0 %744
    %v747 = vmul.f32 %v740, %v745
    %749 = vrot.lane.b32.xlu0 %v747, 32
    %v750 = vpop.permute.xlu0 %749
    %v752 = vadd.f32 %v742, %v750
    %v753 = vtanh.pop %v752
    %755 = vrot.lane.b32.xlu0 %v753, 64
    %v756 = vpop.permute.xlu0 %755
    %v758 = vmul.f32 %v740, %v756
    %v759 = vsel %vm78, %v692, 0
    %761 = vmatpush.msra.mxu0 0.0
    %762 = vmatpush.msra.mxu0 0.0
    %763 = vmatpush.msra.mxu0 0.0
    %764 = vmatpush.msra.mxu0 0.0
    %765 = vmatpush.msra.mxu0 0.0
    %766 = vmatpush.msra.mxu0 0.0
    %767 = vmatpush.msra.mxu0 0.0
    %768 = vmatpush.msra.mxu0 0.0
    %769 = vmatpush.msra.mxu0 0.0
    %770 = vmatpush.msra.mxu0 0.0
    %771 = vmatpush.msra.mxu0 0.0
    %772 = vmatpush.msra.mxu0 0.0
    %773 = vmatpush.msra.mxu0 %v34
    %774 = vmatpush.msra.mxu0 %v33
    %775 = vmatpush.msra.mxu0 %v32
    %776 = vmatpush.msra.mxu0 %v31
    %777 = vmatmul.f32.gmra.mxu0 %v759
    %v778 = vpop.f32.mrf.mxu0
    %v779 = vadd.f32 0.0, %v778
    %780 = vdwg.mxu0
    %v782 = vrot.slane %v779, 6
    %v784 = vadd.f32 %v76, %v782
    %v785 = vxor.u32 %v784, 2147483648
    %v786 = vmul.f32 %v785, 1.442695
    %v787 = vpow.pop %v786
    %v788 = vadd.f32 %v787, 1.0
    %v789 = vrcp.pop %v788
    %v790 = vmul.f32 %v788, %v789
    %v791 = vsub.f32 1.0, %v790
    %v792 = vmul.f32 %v789, %v791
    %v793 = vadd.f32 %v789, %v792
    %vm794 = vweird.f32 %v788
    %vm795 = vweird.f32 %v789
    %vm796 = vmor %vm794, %vm795
    %v797 = vsel %vm796, %v789, %v793
    %v798 = vand.u32 2147483647, %v788
    %vm799 = vcmp.eq.f32.partialorder %v798, 8.507059e+37
    %v800 = vand.u32 %v788, 2147483648
    %v801 = vor.u32 1.1754944e-38, %v800
    %v802 = vsel %vm799, %v801, %v797
    %v803 = vmul.f32 1.0, %v802
    %v804 = vtanh.pop %v784
    %v806 = vrot.slane %v683, 6
    %v808 = vmul.f32 %v803, %v806
    %810 = vrot.lane.b32.xlu0 %v804, 64
    %v811 = vpop.permute.xlu0 %810
    %v813 = vmul.f32 %v803, %v811
    %815 = vrot.lane.b32.xlu0 %v813, 32
    %v816 = vpop.permute.xlu0 %815
    %v818 = vadd.f32 %v808, %v816
    %v819 = vtanh.pop %v818
    %821 = vrot.lane.b32.xlu0 %v819, 64
    %v822 = vpop.permute.xlu0 %821
    %v824 = vmul.f32 %v803, %v822
    %826 = vrot.lane.b32.xlu0 %v824, 32
    %v827 = vpop.permute.xlu0 %826
    %v830 = vrot.slane %v758, 6
    %831 = vrot.lane.b32.xlu0 %v830, 64
    %v832 = vpop.permute.xlu0 %831
    %v834 = vsel %vm78, %v827, %v832
    %v836 = vrot.slane %v834, 2
    %v837 = vsel %vm146, %v836, 0
    %839 = vmatpush.msra.mxu0 0.0
    %840 = vmatpush.msra.mxu0 0.0
    %841 = vmatpush.msra.mxu0 0.0
    %842 = vmatpush.msra.mxu0 0.0
    %843 = vmatpush.msra.mxu0 0.0
    %844 = vmatpush.msra.mxu0 0.0
    %845 = vmatpush.msra.mxu0 0.0
    %846 = vmatpush.msra.mxu0 0.0
    %847 = vmatpush.msra.mxu0 %v43
    %848 = vmatpush.msra.mxu0 %v42
    %849 = vmatpush.msra.mxu0 %v41
    %850 = vmatpush.msra.mxu0 %v40
    %851 = vmatpush.msra.mxu0 %v39
    %852 = vmatpush.msra.mxu0 %v38
    %853 = vmatpush.msra.mxu0 %v37
    %854 = vmatpush.msra.mxu0 %v36
    %855 = vmatmul.f32.gmra.mxu0 %v837
    %v856 = vpop.f32.mrf.mxu0
    %v857 = vadd.f32 %v145, %v856
    %858 = vdwg.mxu0
    %v859 = vxor.u32 %v857, 2147483648
    %v860 = vmul.f32 %v859, 1.442695
    %v861 = vpow.pop %v860
    %v862 = vadd.f32 %v861, 1.0
    %v863 = vrcp.pop %v862
    %v864 = vmul.f32 %v862, %v863
    %v865 = vsub.f32 1.0, %v864
    %v866 = vmul.f32 %v863, %v865
    %v867 = vadd.f32 %v863, %v866
    %vm868 = vweird.f32 %v862
    %vm869 = vweird.f32 %v863
    %vm870 = vmor %vm868, %vm869
    %v871 = vsel %vm870, %v863, %v867
    %v872 = vand.u32 2147483647, %v862
    %vm873 = vcmp.eq.f32.partialorder %v872, 8.507059e+37
    %v874 = vand.u32 %v862, 2147483648
    %v875 = vor.u32 1.1754944e-38, %v874
    %v876 = vsel %vm873, %v875, %v871
    %v877 = vmul.f32 1.0, %v876
    %v878 = vtanh.pop %v857
    %v879 = vmul.f32 %v877, %v752
    %881 = vrot.lane.b32.xlu0 %v878, 64
    %v882 = vpop.permute.xlu0 %881
    %v884 = vmul.f32 %v877, %v882
    %886 = vrot.lane.b32.xlu0 %v884, 32
    %v887 = vpop.permute.xlu0 %886
    %v889 = vadd.f32 %v879, %v887
    %v890 = vtanh.pop %v889
    %892 = vrot.lane.b32.xlu0 %v890, 64
    %v893 = vpop.permute.xlu0 %892
    %v895 = vmul.f32 %v877, %v893
    %v896 = vrot.slane %v824, 2
    %897 = vrot.lane.b32.xlu0 %v896, 32
    %v898 = vpop.permute.xlu0 %897
    %v899 = vsel %vm78, %v898, 0
    %901 = vmatpush.msra.mxu0 0.0
    %902 = vmatpush.msra.mxu0 0.0
    %903 = vmatpush.msra.mxu0 0.0
    %904 = vmatpush.msra.mxu0 0.0
    %905 = vmatpush.msra.mxu0 0.0
    %906 = vmatpush.msra.mxu0 0.0
    %907 = vmatpush.msra.mxu0 0.0
    %908 = vmatpush.msra.mxu0 0.0
    %909 = vmatpush.msra.mxu0 0.0
    %910 = vmatpush.msra.mxu0 0.0
    %911 = vmatpush.msra.mxu0 0.0
    %912 = vmatpush.msra.mxu0 0.0
    %913 = vmatpush.msra.mxu0 %v34
    %914 = vmatpush.msra.mxu0 %v33
    %915 = vmatpush.msra.mxu0 %v32
    %916 = vmatpush.msra.mxu0 %v31
    %917 = vmatmul.f32.gmra.mxu0 %v899
    %v918 = vpop.f32.mrf.mxu0
    %v919 = vadd.f32 0.0, %v918
    %920 = vdwg.mxu0
    %v922 = vrot.slane %v919, 4
    %v924 = vadd.f32 %v76, %v922
    %v925 = vxor.u32 %v924, 2147483648
    %v926 = vmul.f32 %v925, 1.442695
    %v927 = vpow.pop %v926
    %v928 = vadd.f32 %v927, 1.0
    %v929 = vrcp.pop %v928
    %v930 = vmul.f32 %v928, %v929
    %v931 = vsub.f32 1.0, %v930
    %v932 = vmul.f32 %v929, %v931
    %v933 = vadd.f32 %v929, %v932
    %vm934 = vweird.f32 %v928
    %vm935 = vweird.f32 %v929
    %vm936 = vmor %vm934, %vm935
    %v937 = vsel %vm936, %v929, %v933
    %v938 = vand.u32 2147483647, %v928
    %vm939 = vcmp.eq.f32.partialorder %v938, 8.507059e+37
    %v940 = vand.u32 %v928, 2147483648
    %v941 = vor.u32 1.1754944e-38, %v940
    %v942 = vsel %vm939, %v941, %v937
    %v943 = vmul.f32 1.0, %v942
    %v944 = vtanh.pop %v924
    %v946 = vrot.slane %v818, 6
    %v948 = vmul.f32 %v943, %v946
    %950 = vrot.lane.b32.xlu0 %v944, 64
    %v951 = vpop.permute.xlu0 %950
    %v953 = vmul.f32 %v943, %v951
    %955 = vrot.lane.b32.xlu0 %v953, 32
    %v956 = vpop.permute.xlu0 %955
    %v958 = vadd.f32 %v948, %v956
    %v959 = vtanh.pop %v958
    %961 = vrot.lane.b32.xlu0 %v959, 64
    %v962 = vpop.permute.xlu0 %961
    %v964 = vmul.f32 %v943, %v962
    %966 = vrot.lane.b32.xlu0 %v964, 32
    %v967 = vpop.permute.xlu0 %966
    %v970 = vrot.slane %v895, 4
    %971 = vrot.lane.b32.xlu0 %v970, 64
    %v972 = vpop.permute.xlu0 %971
    %v974 = vsel %vm78, %v967, %v972
    %v976 = vrot.slane %v974, 4
    %v977 = vsel %vm146, %v976, 0
    %979 = vmatpush.msra.mxu0 0.0
    %980 = vmatpush.msra.mxu0 0.0
    %981 = vmatpush.msra.mxu0 0.0
    %982 = vmatpush.msra.mxu0 0.0
    %983 = vmatpush.msra.mxu0 0.0
    %984 = vmatpush.msra.mxu0 0.0
    %985 = vmatpush.msra.mxu0 0.0
    %986 = vmatpush.msra.mxu0 0.0
    %987 = vmatpush.msra.mxu0 %v43
    %988 = vmatpush.msra.mxu0 %v42
    %989 = vmatpush.msra.mxu0 %v41
    %990 = vmatpush.msra.mxu0 %v40
    %991 = vmatpush.msra.mxu0 %v39
    %992 = vmatpush.msra.mxu0 %v38
    %993 = vmatpush.msra.mxu0 %v37
    %994 = vmatpush.msra.mxu0 %v36
    %995 = vmatmul.f32.gmra.mxu0 %v977
    %v996 = vpop.f32.mrf.mxu0
    %v997 = vadd.f32 %v145, %v996
    %998 = vdwg.mxu0
    %v999 = vxor.u32 %v997, 2147483648
    %v1000 = vmul.f32 %v999, 1.442695
    %v1001 = vpow.pop %v1000
    %v1002 = vadd.f32 %v1001, 1.0
    %v1003 = vrcp.pop %v1002
    %v1004 = vmul.f32 %v1002, %v1003
    %v1005 = vsub.f32 1.0, %v1004
    %v1006 = vmul.f32 %v1003, %v1005
    %v1007 = vadd.f32 %v1003, %v1006
    %vm1008 = vweird.f32 %v1002
    %vm1009 = vweird.f32 %v1003
    %vm1010 = vmor %vm1008, %vm1009
    %v1011 = vsel %vm1010, %v1003, %v1007
    %v1012 = vand.u32 2147483647, %v1002
    %vm1013 = vcmp.eq.f32.partialorder %v1012, 8.507059e+37
    %v1014 = vand.u32 %v1002, 2147483648
    %v1015 = vor.u32 1.1754944e-38, %v1014
    %v1016 = vsel %vm1013, %v1015, %v1011
    %v1017 = vmul.f32 1.0, %v1016
    %v1018 = vtanh.pop %v997
    %v1019 = vmul.f32 %v1017, %v889
    %1021 = vrot.lane.b32.xlu0 %v1018, 64
    %v1022 = vpop.permute.xlu0 %1021
    %v1024 = vmul.f32 %v1017, %v1022
    %1026 = vrot.lane.b32.xlu0 %v1024, 32
    %v1027 = vpop.permute.xlu0 %1026
    %v1029 = vadd.f32 %v1019, %v1027
    %v1030 = vtanh.pop %v1029
    %1032 = vrot.lane.b32.xlu0 %v1030, 64
    %v1033 = vpop.permute.xlu0 %1032
    %v1035 = vmul.f32 %v1017, %v1033
    %v1036 = vrot.slane %v964, 4
    %1037 = vrot.lane.b32.xlu0 %v1036, 32
    %v1038 = vpop.permute.xlu0 %1037
    %v1039 = vsel %vm78, %v1038, 0
    %1041 = vmatpush.msra.mxu0 0.0
    %1042 = vmatpush.msra.mxu0 0.0
    %1043 = vmatpush.msra.mxu0 0.0
    %1044 = vmatpush.msra.mxu0 0.0
    %1045 = vmatpush.msra.mxu0 0.0
    %1046 = vmatpush.msra.mxu0 0.0
    %1047 = vmatpush.msra.mxu0 0.0
    %1048 = vmatpush.msra.mxu0 0.0
    %1049 = vmatpush.msra.mxu0 0.0
    %1050 = vmatpush.msra.mxu0 0.0
    %1051 = vmatpush.msra.mxu0 0.0
    %1052 = vmatpush.msra.mxu0 0.0
    %1053 = vmatpush.msra.mxu0 %v34
    %1054 = vmatpush.msra.mxu0 %v33
    %1055 = vmatpush.msra.mxu0 %v32
    %1056 = vmatpush.msra.mxu0 %v31
    %1057 = vmatmul.f32.gmra.mxu0 %v1039
    %v1058 = vpop.f32.mrf.mxu0
    %v1059 = vadd.f32 0.0, %v1058
    %1060 = vdwg.mxu0
    %v1062 = vrot.slane %v1059, 2
    %v1064 = vadd.f32 %v76, %v1062
    %v1065 = vxor.u32 %v1064, 2147483648
    %v1066 = vmul.f32 %v1065, 1.442695
    %v1067 = vpow.pop %v1066
    %v1068 = vadd.f32 %v1067, 1.0
    %v1069 = vrcp.pop %v1068
    %v1070 = vmul.f32 %v1068, %v1069
    %v1071 = vsub.f32 1.0, %v1070
    %v1072 = vmul.f32 %v1069, %v1071
    %v1073 = vadd.f32 %v1069, %v1072
    %vm1074 = vweird.f32 %v1068
    %vm1075 = vweird.f32 %v1069
    %vm1076 = vmor %vm1074, %vm1075
    %v1077 = vsel %vm1076, %v1069, %v1073
    %v1078 = vand.u32 2147483647, %v1068
    %vm1079 = vcmp.eq.f32.partialorder %v1078, 8.507059e+37
    %v1080 = vand.u32 %v1068, 2147483648
    %v1081 = vor.u32 1.1754944e-38, %v1080
    %v1082 = vsel %vm1079, %v1081, %v1077
    %v1083 = vmul.f32 1.0, %v1082
    %v1084 = vtanh.pop %v1064
    %v1086 = vrot.slane %v958, 6
    %v1088 = vmul.f32 %v1083, %v1086
    %1090 = vrot.lane.b32.xlu0 %v1084, 64
    %v1091 = vpop.permute.xlu0 %1090
    %v1093 = vmul.f32 %v1083, %v1091
    %1095 = vrot.lane.b32.xlu0 %v1093, 32
    %v1096 = vpop.permute.xlu0 %1095
    %v1098 = vadd.f32 %v1088, %v1096
    %v1099 = vtanh.pop %v1098
    %1101 = vrot.lane.b32.xlu0 %v1099, 64
    %v1102 = vpop.permute.xlu0 %1101
    %v1104 = vmul.f32 %v1083, %v1102
    %1106 = vrot.lane.b32.xlu0 %v1104, 32
    %v1107 = vpop.permute.xlu0 %1106
    %v1110 = vrot.slane %v1035, 2
    %1111 = vrot.lane.b32.xlu0 %v1110, 64
    %v1112 = vpop.permute.xlu0 %1111
    %v1114 = vsel %vm78, %v1107, %v1112
    %v1116 = vrot.slane %v1114, 6
    %v1117 = vsel %vm146, %v1116, 0
    %1119 = vmatpush.msra.mxu0 0.0
    %1120 = vmatpush.msra.mxu0 0.0
    %1121 = vmatpush.msra.mxu0 0.0
    %1122 = vmatpush.msra.mxu0 0.0
    %1123 = vmatpush.msra.mxu0 0.0
    %1124 = vmatpush.msra.mxu0 0.0
    %1125 = vmatpush.msra.mxu0 0.0
    %1126 = vmatpush.msra.mxu0 0.0
    %1127 = vmatpush.msra.mxu0 %v43
    %1128 = vmatpush.msra.mxu0 %v42
    %1129 = vmatpush.msra.mxu0 %v41
    %1130 = vmatpush.msra.mxu0 %v40
    %1131 = vmatpush.msra.mxu0 %v39
    %1132 = vmatpush.msra.mxu0 %v38
    %1133 = vmatpush.msra.mxu0 %v37
    %1134 = vmatpush.msra.mxu0 %v36
    %1135 = vmatmul.f32.gmra.mxu0 %v1117
    %v1136 = vpop.f32.mrf.mxu0
    %v1137 = vadd.f32 %v145, %v1136
    %1138 = vdwg.mxu0
    %v1139 = vxor.u32 %v1137, 2147483648
    %v1140 = vmul.f32 %v1139, 1.442695
    %v1141 = vpow.pop %v1140
    %v1142 = vadd.f32 %v1141, 1.0
    %v1143 = vrcp.pop %v1142
    %v1144 = vmul.f32 %v1142, %v1143
    %v1145 = vsub.f32 1.0, %v1144
    %v1146 = vmul.f32 %v1143, %v1145
    %v1147 = vadd.f32 %v1143, %v1146
    %vm1148 = vweird.f32 %v1142
    %vm1149 = vweird.f32 %v1143
    %vm1150 = vmor %vm1148, %vm1149
    %v1151 = vsel %vm1150, %v1143, %v1147
    %v1152 = vand.u32 2147483647, %v1142
    %vm1153 = vcmp.eq.f32.partialorder %v1152, 8.507059e+37
    %v1154 = vand.u32 %v1142, 2147483648
    %v1155 = vor.u32 1.1754944e-38, %v1154
    %v1156 = vsel %vm1153, %v1155, %v1151
    %v1157 = vmul.f32 1.0, %v1156
    %v1158 = vtanh.pop %v1137
    %v1159 = vmul.f32 %v1157, %v1029
    %1161 = vrot.lane.b32.xlu0 %v1158, 64
    %v1162 = vpop.permute.xlu0 %1161
    %v1164 = vmul.f32 %v1157, %v1162
    %1166 = vrot.lane.b32.xlu0 %v1164, 32
    %v1167 = vpop.permute.xlu0 %1166
    %v1169 = vadd.f32 %v1159, %v1167
    %v1170 = vtanh.pop %v1169
    %1172 = vrot.lane.b32.xlu0 %v1170, 64
    %v1173 = vpop.permute.xlu0 %1172
    %v1175 = vmul.f32 %v1157, %v1173
    %v1176 = vperm.slane %v44, 1
    %1178 = vrot.lane.b32.xlu0 %v1176, 96
    %v1179 = vpop.permute.xlu0 %1178
    %v1181 = vmul.f32 %v1175, %v1179
    %1183 = vrot.lane.b32.xlu0 %v1181, 32
    %v1184 = vpop.permute.xlu0 %1183
    %vm1186 = vcmask 254976
    %v1187 = vsel %vm1186, %v1184, 0.0
    %1188 = vadd.xlane.f32.xlu0 %v1187
    %v1189 = vpop.xlane.xlu0 %1188
    %v1190 = vperm.slane %v44, 2
    %v1191 = vadd.f32 %v1189, %v1190
    %vm1192 = vcmask 1024
    %1193 = vst.msk [vmem:[%s3] sm:$0x3] %vm1192, %v1191
    // Predicated region
    $region18: #{tec_predictor_forward.1} parent=1 // pred_check
      _
    $region19: #{tec_predictor_forward.1} parent=1 // pred_check_branch
      %1195 = sbr.rel (0) target = $region21
    $region20: #{tec_predictor_forward.1} parent=1 // pred_region
      _
    $region21: #{tec_predictor_forward.1} parent=1 // pred_fallthru
      _
    // Predicated region
    $region22: #{tec_predictor_forward.1} parent=1 // pred_check
      _
    $region23: #{tec_predictor_forward.1} parent=1 // pred_check_branch
      %1197 = sbr.rel (0) target = $region25
    $region24: #{tec_predictor_forward.1} parent=1 // pred_region
      _
    $region25: #{tec_predictor_forward.1} parent=1 // pred_fallthru
      _
    %1198 = vsyncpa [#allocation3], 1

</llo_original>
